<compile_context>
chip_gen: v5e
topology: v5e:2x2
jax: 0.10.0
libtpu: 0.0.40
codegen_flags: <defaults>
</compile_context>

<pallas_src>
import math
import functools

import jax
import jax.numpy as jnp
from jax import lax
from jax.experimental import pallas as pl
from jax.experimental.pallas import tpu as pltpu


def _layer_norm(x, w, b, eps=1e-5):
    mu = jnp.mean(x, axis=-1, keepdims=True)
    xc = x - mu
    var = jnp.mean(xc * xc, axis=-1, keepdims=True)
    return xc * lax.rsqrt(var + eps) * w + b


def _gelu_tanh(x):
    # PyTorch nn.GELU(approximate='tanh')
    c = math.sqrt(2.0 / math.pi)
    return 0.5 * x * (1.0 + jnp.tanh(c * (x + 0.044715 * x * x * x)))


def block_kernel(x_ref,
                 ln1w_ref, ln1b_ref,
                 wqkv_ref, bqkv_ref, wproj_ref, bproj_ref,
                 ln2w_ref, ln2b_ref,
                 wfc_ref, bfc_ref, wfc2_ref, bfc2_ref,
                 o_ref, *, n_head, seq_len):
    """Single grid step: the whole (B*T, C) batch slab lives in VMEM."""
    N, C = x_ref.shape          # N = B*T rows, C = n_embd (multiple of 128)
    T = seq_len
    B = N // T
    H = n_head
    D = C // H

    x = x_ref[...].astype(jnp.float32)                       # (N, C)

    # ---------------- ln_1 ----------------
    h1 = _layer_norm(x, ln1w_ref[...], ln1b_ref[...])

    # ---------------- attention: fused QKV projection (one MXU pass) -------
    qkv = jnp.dot(h1, wqkv_ref[...],
                  preferred_element_type=jnp.float32) + bqkv_ref[...]  # (N, 3C)
    scale = 1.0 / math.sqrt(D + 1e-08)                        # matches sqrt(d + 1e-8)
    q = qkv[:, 0 * C:1 * C] * scale                           # fold scale into Q
    k = qkv[:, 1 * C:2 * C]
    v = qkv[:, 2 * C:3 * C]

    # Additive mask (finite): all rows attend everywhere except the last row,
    # which only attends to the last column.  Built once.
    row = lax.broadcasted_iota(jnp.int32, (T, T), 0)
    col = lax.broadcasted_iota(jnp.int32, (T, T), 1)
    add_mask = jnp.where(jnp.logical_or(row < T - 1, col == T - 1),
                         0.0, -1e30).astype(jnp.float32)

    wproj = wproj_ref[...]                                    # (C, C), resident

    # Static loops over B and H (both tiny).  Each head's output is folded into
    # the output projection via the sublane-aligned row block wproj[h*D:(h+1)*D]
    # so no lane-dim concatenate / relayout of head outputs is needed.
    att_rows = []
    for b in range(B):
        r0 = b * T
        qb = q[r0:r0 + T, :]
        kb = k[r0:r0 + T, :]
        vb = v[r0:r0 + T, :]
        acc = jnp.zeros((T, C), jnp.float32)
        for h in range(H):
            c0 = h * D
            qh = qb[:, c0:c0 + D]                             # (T, D)
            kh = kb[:, c0:c0 + D]
            vh = vb[:, c0:c0 + D]
            s = jnp.dot(qh, kh.T, preferred_element_type=jnp.float32)  # (T, T)
            s = s + add_mask
            m = jnp.max(s, axis=-1, keepdims=True)
            p = jnp.exp(s - m)                                # unnormalized probs
            denom = jnp.sum(p, axis=-1, keepdims=True)
            yh = jnp.dot(p, vh, preferred_element_type=jnp.float32)    # (T, D)
            yh = yh * pl.reciprocal(denom, approx=True)       # EUP, ~free
            acc = acc + jnp.dot(yh, wproj[c0:c0 + D, :],
                                preferred_element_type=jnp.float32)
        att_rows.append(acc)
    att = jnp.concatenate(att_rows, axis=0) + bproj_ref[...]  # row (sublane) concat

    # ---------------- residual 1 ----------------
    x1 = x + att

    # ---------------- ln_2 + MLP ----------------
    h2 = _layer_norm(x1, ln2w_ref[...], ln2b_ref[...])
    f = jnp.dot(h2, wfc_ref[...], preferred_element_type=jnp.float32) + bfc_ref[...]
    f = _gelu_tanh(f)
    mlp = jnp.dot(f, wfc2_ref[...], preferred_element_type=jnp.float32) + bfc2_ref[...]

    # ---------------- residual 2 (lane-dense store: last dim = C = k*128) ---
    o_ref[...] = (x1 + mlp).astype(o_ref.dtype)


def octo_block(x, params, n_head):
    """Full Block forward.  x: (B, T, C)."""
    B, T, C = x.shape
    assert C % n_head == 0
    x2 = x.reshape(B * T, C)                     # lane-dense slab, one grid step

    kernel = functools.partial(block_kernel, n_head=n_head, seq_len=T)

    def full(a):
        return pl.BlockSpec(a.shape, lambda i, nd=a.ndim: (0,) * nd)

    out = pl.pallas_call(
        kernel,
        out_shape=jax.ShapeDtypeStruct((B * T, C), x.dtype),
        grid=(1,),
        in_specs=[full(x2)] + [full(p) for p in params],
        out_specs=pl.BlockSpec((B * T, C), lambda i: (0, 0)),
        compiler_params=pltpu.CompilerParams(
            dimension_semantics=("arbitrary",)),
    )(x2, *params)
    return out.reshape(B, T, C)


def reference(x, params, n_head):
    """Pure-JAX mirror of the PyTorch Block.forward, for verification."""
    (ln1w, ln1b, w_qkv, b_qkv, w_proj, b_proj,
     ln2w, ln2b, w_fc, b_fc, w_fc2, b_fc2) = params
    B, T, C = x.shape
    H = n_head
    D = C // H

    def ln(t, w, b):
        mu = t.mean(-1, keepdims=True)
        var = ((t - mu) ** 2).mean(-1, keepdims=True)
        return (t - mu) / jnp.sqrt(var + 1e-5) * w[0] + b[0]

    h = ln(x, ln1w, ln1b)
    qkv = h @ w_qkv + b_qkv[0]
    q, k, v = jnp.split(qkv, 3, axis=-1)
    q = q.reshape(B, T, H, D).transpose(0, 2, 1, 3)
    k = k.reshape(B, T, H, D).transpose(0, 2, 1, 3)
    v = v.reshape(B, T, H, D).transpose(0, 2, 1, 3)
    mask = jnp.ones((T, T), dtype=bool).at[-1, :-1].set(False)
    s = jnp.einsum("bhqd,bhkd->bhqk", q, k) / math.sqrt(D + 1e-08)
    s = jnp.where(mask, s, -jnp.inf)
    p = jax.nn.softmax(s, axis=-1)
    y = jnp.einsum("bhqk,bhkd->bhqd", p, v)
    y = y.transpose(0, 2, 1, 3).reshape(B, T, C)
    att = y @ w_proj + b_proj[0]
    x1 = x + att
    h2 = ln(x1, ln2w, ln2b)
    f = jax.nn.gelu(h2 @ w_fc + b_fc[0], approximate=True)
    mlp = f @ w_fc2 + b_fc2[0]
    return x1 + mlp


if __name__ == "__main__":
    # Small config consistent with the module: n_embd % n_head == 0,
    # n_embd a multiple of 128 so all lane slices / stores are aligned.
    B, T, C, H = 2, 16, 128, 4

    key = jax.random.PRNGKey(0)
    ks = jax.random.split(key, 13)

    x = jax.random.normal(ks[0], (B, T, C), dtype=jnp.float32)

    def w(k, shape, s=0.05):
        return jax.random.normal(k, shape, dtype=jnp.float32) * s

    params = (
        1.0 + 0.1 * jax.random.normal(ks[1], (1, C), jnp.float32),   # ln_1 weight
        w(ks[2], (1, C)),                                            # ln_1 bias
        w(ks[3], (C, 3 * C)),                                        # c_attn W (in, out)
        w(ks[4], (1, 3 * C)),                                        # c_attn b
        w(ks[5], (C, C)),                                            # attn c_proj W
        w(ks[6], (1, C)),                                            # attn c_proj b
        1.0 + 0.1 * jax.random.normal(ks[7], (1, C), jnp.float32),   # ln_2 weight
        w(ks[8], (1, C)),                                            # ln_2 bias
        w(ks[9], (C, 4 * C)),                                        # mlp c_fc W
        w(ks[10], (1, 4 * C)),                                       # mlp c_fc b
        w(ks[11], (4 * C, C)),                                       # mlp c_proj W
        w(ks[12], (1, C)),                                           # mlp c_proj b
    )

    out = octo_block(x, params, H)
    out = jax.block_until_ready(out)

    ref = reference(x, params, H)
    assert out.shape == (B, T, C)
    max_err = jnp.max(jnp.abs(out - ref))
    assert jnp.allclose(out, ref, atol=1e-2, rtol=1e-2), \
        f"mismatch vs reference (max abs err {max_err})"

    print("KERNEL_OK")
</pallas_src>

<mosaic_0001>
module attributes {stable_mosaic.version = 11 : i64} {
  func.func @block_kernel(%arg0: i32, %arg1: memref<32x128xf32, #tpu.memory_space<vmem>>, %arg2: memref<1x128xf32, #tpu.memory_space<vmem>>, %arg3: memref<1x128xf32, #tpu.memory_space<vmem>>, %arg4: memref<128x384xf32, #tpu.memory_space<vmem>>, %arg5: memref<1x384xf32, #tpu.memory_space<vmem>>, %arg6: memref<128x128xf32, #tpu.memory_space<vmem>>, %arg7: memref<1x128xf32, #tpu.memory_space<vmem>>, %arg8: memref<1x128xf32, #tpu.memory_space<vmem>>, %arg9: memref<1x128xf32, #tpu.memory_space<vmem>>, %arg10: memref<128x512xf32, #tpu.memory_space<vmem>>, %arg11: memref<1x512xf32, #tpu.memory_space<vmem>>, %arg12: memref<512x128xf32, #tpu.memory_space<vmem>>, %arg13: memref<1x128xf32, #tpu.memory_space<vmem>>, %arg14: memref<32x128xf32, #tpu.memory_space<vmem>>) attributes {dimension_semantics = [#tpu.dimension_semantics<arbitrary>], iteration_bounds = array<i64: 1>, scalar_prefetch = 0 : i64, scratch_operands = 0 : i64, tpu.core_type = #tpu.core_type<tc>, window_params = [{pipeline_mode = #tpu.pipeline_mode<synchronous>, transform_indices = @transform_0, window_bounds = array<i64: 32, 128>}, {pipeline_mode = #tpu.pipeline_mode<synchronous>, transform_indices = @transform_1, window_bounds = array<i64: 1, 128>}, {pipeline_mode = #tpu.pipeline_mode<synchronous>, transform_indices = @transform_2, window_bounds = array<i64: 1, 128>}, {pipeline_mode = #tpu.pipeline_mode<synchronous>, transform_indices = @transform_3, window_bounds = array<i64: 128, 384>}, {pipeline_mode = #tpu.pipeline_mode<synchronous>, transform_indices = @transform_4, window_bounds = array<i64: 1, 384>}, {pipeline_mode = #tpu.pipeline_mode<synchronous>, transform_indices = @transform_5, window_bounds = array<i64: 128, 128>}, {pipeline_mode = #tpu.pipeline_mode<synchronous>, transform_indices = @transform_6, window_bounds = array<i64: 1, 128>}, {pipeline_mode = #tpu.pipeline_mode<synchronous>, transform_indices = @transform_7, window_bounds = array<i64: 1, 128>}, {pipeline_mode = #tpu.pipeline_mode<synchronous>, transform_indices = @transform_8, window_bounds = array<i64: 1, 128>}, {pipeline_mode = #tpu.pipeline_mode<synchronous>, transform_indices = @transform_9, window_bounds = array<i64: 128, 512>}, {pipeline_mode = #tpu.pipeline_mode<synchronous>, transform_indices = @transform_10, window_bounds = array<i64: 1, 512>}, {pipeline_mode = #tpu.pipeline_mode<synchronous>, transform_indices = @transform_11, window_bounds = array<i64: 512, 128>}, {pipeline_mode = #tpu.pipeline_mode<synchronous>, transform_indices = @transform_12, window_bounds = array<i64: 1, 128>}, {pipeline_mode = #tpu.pipeline_mode<synchronous>, transform_indices = @transform_13, window_bounds = array<i64: 32, 128>}]} {
    %c0 = arith.constant 0 : index
    %c0_0 = arith.constant 0 : index
    %0 = vector.load %arg1[%c0, %c0_0] : memref<32x128xf32, #tpu.memory_space<vmem>>, vector<32x128xf32>
    %c0_1 = arith.constant 0 : index
    %c0_2 = arith.constant 0 : index
    %1 = vector.load %arg2[%c0_1, %c0_2] : memref<1x128xf32, #tpu.memory_space<vmem>>, vector<1x128xf32>
    %c0_3 = arith.constant 0 : index
    %c0_4 = arith.constant 0 : index
    %2 = vector.load %arg3[%c0_3, %c0_4] : memref<1x128xf32, #tpu.memory_space<vmem>>, vector<1x128xf32>
    %cst = arith.constant dense<0.000000e+00> : vector<32xf32>
    %3 = vector.multi_reduction <add>, %0, %cst [1] : vector<32x128xf32> to vector<32xf32>
    %4 = vector.shape_cast %3 : vector<32xf32> to vector<32x1xf32>
    %cst_5 = arith.constant 1.280000e+02 : f32
    %5 = vector.broadcast %cst_5 : f32 to vector<32x1xf32>
    %6 = arith.divf %4, %5 : vector<32x1xf32>
    %7 = vector.broadcast %6 : vector<32x1xf32> to vector<32x128xf32>
    %8 = arith.subf %0, %7 : vector<32x128xf32>
    %9 = arith.mulf %8, %8 : vector<32x128xf32>
    %cst_6 = arith.constant dense<0.000000e+00> : vector<32xf32>
    %10 = vector.multi_reduction <add>, %9, %cst_6 [1] : vector<32x128xf32> to vector<32xf32>
    %11 = vector.shape_cast %10 : vector<32xf32> to vector<32x1xf32>
    %cst_7 = arith.constant 1.280000e+02 : f32
    %12 = vector.broadcast %cst_7 : f32 to vector<32x1xf32>
    %13 = arith.divf %11, %12 : vector<32x1xf32>
    %cst_8 = arith.constant 9.99999974E-6 : f32
    %14 = vector.broadcast %cst_8 : f32 to vector<32x1xf32>
    %15 = arith.addf %13, %14 : vector<32x1xf32>
    %16 = math.rsqrt %15 : vector<32x1xf32>
    %17 = vector.broadcast %16 : vector<32x1xf32> to vector<32x128xf32>
    %18 = arith.mulf %8, %17 : vector<32x128xf32>
    %19 = vector.broadcast %1 : vector<1x128xf32> to vector<32x128xf32>
    %20 = arith.mulf %18, %19 : vector<32x128xf32>
    %21 = vector.broadcast %2 : vector<1x128xf32> to vector<32x128xf32>
    %22 = arith.addf %20, %21 : vector<32x128xf32>
    %c0_9 = arith.constant 0 : index
    %c0_10 = arith.constant 0 : index
    %23 = vector.load %arg4[%c0_9, %c0_10] : memref<128x384xf32, #tpu.memory_space<vmem>>, vector<128x384xf32>
    %cst_11 = arith.constant dense<0.000000e+00> : vector<32x384xf32>
    %24 = tpu.matmul %22, %23, %cst_11 {dimension_numbers = #tpu.dot_dimension_numbers<[1], [0], [0], [1], [0, 0, 1, 1], [], []>} : vector<32x128xf32>, vector<128x384xf32>, vector<32x384xf32> -> vector<32x384xf32>
    %c0_12 = arith.constant 0 : index
    %c0_13 = arith.constant 0 : index
    %25 = vector.load %arg5[%c0_12, %c0_13] : memref<1x384xf32, #tpu.memory_space<vmem>>, vector<1x384xf32>
    %26 = vector.broadcast %25 : vector<1x384xf32> to vector<32x384xf32>
    %27 = arith.addf %24, %26 : vector<32x384xf32>
    %28 = vector.extract_strided_slice %27 {offsets = [0, 0], sizes = [32, 128], strides = [1, 1]} : vector<32x384xf32> to vector<32x128xf32>
    %cst_14 = arith.constant 0.176776692 : f32
    %29 = vector.broadcast %cst_14 : f32 to vector<32x128xf32>
    %30 = arith.mulf %28, %29 : vector<32x128xf32>
    %31 = vector.extract_strided_slice %27 {offsets = [0, 128], sizes = [32, 128], strides = [1, 1]} : vector<32x384xf32> to vector<32x128xf32>
    %32 = vector.extract_strided_slice %27 {offsets = [0, 256], sizes = [32, 128], strides = [1, 1]} : vector<32x384xf32> to vector<32x128xf32>
    %33 = tpu.iota {dimensions = array<i32: 0>} : vector<16x16xi32>
    %34 = tpu.iota {dimensions = array<i32: 1>} : vector<16x16xi32>
    %c15_i32 = arith.constant 15 : i32
    %35 = vector.broadcast %c15_i32 : i32 to vector<16x16xi32>
    %36 = arith.cmpi slt, %33, %35 : vector<16x16xi32>
    %c15_i32_15 = arith.constant 15 : i32
    %37 = vector.broadcast %c15_i32_15 : i32 to vector<16x16xi32>
    %38 = arith.cmpi eq, %34, %37 : vector<16x16xi32>
    %39 = arith.ori %36, %38 : vector<16x16xi1>
    %cst_16 = arith.constant 0.000000e+00 : f32
    %cst_17 = arith.constant -1.000000e+30 : f32
    %40 = vector.broadcast %cst_16 : f32 to vector<16x16xf32>
    %41 = vector.broadcast %cst_17 : f32 to vector<16x16xf32>
    %42 = arith.select %39, %40, %41 : vector<16x16xi1>, vector<16x16xf32>
    %c0_18 = arith.constant 0 : index
    %c0_19 = arith.constant 0 : index
    %43 = vector.load %arg6[%c0_18, %c0_19] : memref<128x128xf32, #tpu.memory_space<vmem>>, vector<128x128xf32>
    %44 = vector.extract_strided_slice %30 {offsets = [0, 0], sizes = [16, 128], strides = [1, 1]} : vector<32x128xf32> to vector<16x128xf32>
    %45 = vector.extract_strided_slice %31 {offsets = [0, 0], sizes = [16, 128], strides = [1, 1]} : vector<32x128xf32> to vector<16x128xf32>
    %46 = vector.extract_strided_slice %32 {offsets = [0, 0], sizes = [16, 128], strides = [1, 1]} : vector<32x128xf32> to vector<16x128xf32>
    %cst_20 = arith.constant 0.000000e+00 : f32
    %47 = vector.broadcast %cst_20 : f32 to vector<16x128xf32>
    %48 = vector.extract_strided_slice %44 {offsets = [0, 0], sizes = [16, 32], strides = [1, 1]} : vector<16x128xf32> to vector<16x32xf32>
    %49 = vector.extract_strided_slice %45 {offsets = [0, 0], sizes = [16, 32], strides = [1, 1]} : vector<16x128xf32> to vector<16x32xf32>
    %50 = vector.extract_strided_slice %46 {offsets = [0, 0], sizes = [16, 32], strides = [1, 1]} : vector<16x128xf32> to vector<16x32xf32>
    %51 = tpu.transpose %49, [1, 0] : vector<16x32xf32> -> vector<32x16xf32>
    %cst_21 = arith.constant dense<0.000000e+00> : vector<16x16xf32>
    %52 = tpu.matmul %48, %51, %cst_21 {dimension_numbers = #tpu.dot_dimension_numbers<[1], [0], [0], [1], [0, 0, 1, 1], [], []>} : vector<16x32xf32>, vector<32x16xf32>, vector<16x16xf32> -> vector<16x16xf32>
    %53 = arith.addf %52, %42 : vector<16x16xf32>
    %cst_22 = arith.constant dense<0xFF800000> : vector<16xf32>
    %54 = vector.multi_reduction <maximumf>, %53, %cst_22 [1] : vector<16x16xf32> to vector<16xf32>
    %55 = vector.shape_cast %54 : vector<16xf32> to vector<16x1xf32>
    %56 = vector.broadcast %55 : vector<16x1xf32> to vector<16x16xf32>
    %57 = arith.subf %53, %56 : vector<16x16xf32>
    %58 = math.exp %57 : vector<16x16xf32>
    %cst_23 = arith.constant dense<0.000000e+00> : vector<16xf32>
    %59 = vector.multi_reduction <add>, %58, %cst_23 [1] : vector<16x16xf32> to vector<16xf32>
    %60 = vector.shape_cast %59 : vector<16xf32> to vector<16x1xf32>
    %cst_24 = arith.constant dense<0.000000e+00> : vector<16x32xf32>
    %61 = tpu.matmul %58, %50, %cst_24 {dimension_numbers = #tpu.dot_dimension_numbers<[1], [0], [0], [1], [0, 0, 1, 1], [], []>} : vector<16x16xf32>, vector<16x32xf32>, vector<16x32xf32> -> vector<16x32xf32>
    %62 = tpu.reciprocal %60 {approx = true} : vector<16x1xf32> -> vector<16x1xf32>
    %63 = vector.broadcast %62 : vector<16x1xf32> to vector<16x32xf32>
    %64 = arith.mulf %61, %63 : vector<16x32xf32>
    %65 = vector.extract_strided_slice %43 {offsets = [0, 0], sizes = [32, 128], strides = [1, 1]} : vector<128x128xf32> to vector<32x128xf32>
    %cst_25 = arith.constant dense<0.000000e+00> : vector<16x128xf32>
    %66 = tpu.matmul %64, %65, %cst_25 {dimension_numbers = #tpu.dot_dimension_numbers<[1], [0], [0], [1], [0, 0, 1, 1], [], []>} : vector<16x32xf32>, vector<32x128xf32>, vector<16x128xf32> -> vector<16x128xf32>
    %67 = arith.addf %47, %66 : vector<16x128xf32>
    %68 = vector.extract_strided_slice %44 {offsets = [0, 32], sizes = [16, 32], strides = [1, 1]} : vector<16x128xf32> to vector<16x32xf32>
    %69 = vector.extract_strided_slice %45 {offsets = [0, 32], sizes = [16, 32], strides = [1, 1]} : vector<16x128xf32> to vector<16x32xf32>
    %70 = vector.extract_strided_slice %46 {offsets = [0, 32], sizes = [16, 32], strides = [1, 1]} : vector<16x128xf32> to vector<16x32xf32>
    %71 = tpu.transpose %69, [1, 0] : vector<16x32xf32> -> vector<32x16xf32>
    %cst_26 = arith.constant dense<0.000000e+00> : vector<16x16xf32>
    %72 = tpu.matmul %68, %71, %cst_26 {dimension_numbers = #tpu.dot_dimension_numbers<[1], [0], [0], [1], [0, 0, 1, 1], [], []>} : vector<16x32xf32>, vector<32x16xf32>, vector<16x16xf32> -> vector<16x16xf32>
    %73 = arith.addf %72, %42 : vector<16x16xf32>
    %cst_27 = arith.constant dense<0xFF800000> : vector<16xf32>
    %74 = vector.multi_reduction <maximumf>, %73, %cst_27 [1] : vector<16x16xf32> to vector<16xf32>
    %75 = vector.shape_cast %74 : vector<16xf32> to vector<16x1xf32>
    %76 = vector.broadcast %75 : vector<16x1xf32> to vector<16x16xf32>
    %77 = arith.subf %73, %76 : vector<16x16xf32>
    %78 = math.exp %77 : vector<16x16xf32>
    %cst_28 = arith.constant dense<0.000000e+00> : vector<16xf32>
    %79 = vector.multi_reduction <add>, %78, %cst_28 [1] : vector<16x16xf32> to vector<16xf32>
    %80 = vector.shape_cast %79 : vector<16xf32> to vector<16x1xf32>
    %cst_29 = arith.constant dense<0.000000e+00> : vector<16x32xf32>
    %81 = tpu.matmul %78, %70, %cst_29 {dimension_numbers = #tpu.dot_dimension_numbers<[1], [0], [0], [1], [0, 0, 1, 1], [], []>} : vector<16x16xf32>, vector<16x32xf32>, vector<16x32xf32> -> vector<16x32xf32>
    %82 = tpu.reciprocal %80 {approx = true} : vector<16x1xf32> -> vector<16x1xf32>
    %83 = vector.broadcast %82 : vector<16x1xf32> to vector<16x32xf32>
    %84 = arith.mulf %81, %83 : vector<16x32xf32>
    %85 = vector.extract_strided_slice %43 {offsets = [32, 0], sizes = [32, 128], strides = [1, 1]} : vector<128x128xf32> to vector<32x128xf32>
    %cst_30 = arith.constant dense<0.000000e+00> : vector<16x128xf32>
    %86 = tpu.matmul %84, %85, %cst_30 {dimension_numbers = #tpu.dot_dimension_numbers<[1], [0], [0], [1], [0, 0, 1, 1], [], []>} : vector<16x32xf32>, vector<32x128xf32>, vector<16x128xf32> -> vector<16x128xf32>
    %87 = arith.addf %67, %86 : vector<16x128xf32>
    %88 = vector.extract_strided_slice %44 {offsets = [0, 64], sizes = [16, 32], strides = [1, 1]} : vector<16x128xf32> to vector<16x32xf32>
    %89 = vector.extract_strided_slice %45 {offsets = [0, 64], sizes = [16, 32], strides = [1, 1]} : vector<16x128xf32> to vector<16x32xf32>
    %90 = vector.extract_strided_slice %46 {offsets = [0, 64], sizes = [16, 32], strides = [1, 1]} : vector<16x128xf32> to vector<16x32xf32>
    %91 = tpu.transpose %89, [1, 0] : vector<16x32xf32> -> vector<32x16xf32>
    %cst_31 = arith.constant dense<0.000000e+00> : vector<16x16xf32>
    %92 = tpu.matmul %88, %91, %cst_31 {dimension_numbers = #tpu.dot_dimension_numbers<[1], [0], [0], [1], [0, 0, 1, 1], [], []>} : vector<16x32xf32>, vector<32x16xf32>, vector<16x16xf32> -> vector<16x16xf32>
    %93 = arith.addf %92, %42 : vector<16x16xf32>
    %cst_32 = arith.constant dense<0xFF800000> : vector<16xf32>
    %94 = vector.multi_reduction <maximumf>, %93, %cst_32 [1] : vector<16x16xf32> to vector<16xf32>
    %95 = vector.shape_cast %94 : vector<16xf32> to vector<16x1xf32>
    %96 = vector.broadcast %95 : vector<16x1xf32> to vector<16x16xf32>
    %97 = arith.subf %93, %96 : vector<16x16xf32>
    %98 = math.exp %97 : vector<16x16xf32>
    %cst_33 = arith.constant dense<0.000000e+00> : vector<16xf32>
    %99 = vector.multi_reduction <add>, %98, %cst_33 [1] : vector<16x16xf32> to vector<16xf32>
    %100 = vector.shape_cast %99 : vector<16xf32> to vector<16x1xf32>
    %cst_34 = arith.constant dense<0.000000e+00> : vector<16x32xf32>
    %101 = tpu.matmul %98, %90, %cst_34 {dimension_numbers = #tpu.dot_dimension_numbers<[1], [0], [0], [1], [0, 0, 1, 1], [], []>} : vector<16x16xf32>, vector<16x32xf32>, vector<16x32xf32> -> vector<16x32xf32>
    %102 = tpu.reciprocal %100 {approx = true} : vector<16x1xf32> -> vector<16x1xf32>
    %103 = vector.broadcast %102 : vector<16x1xf32> to vector<16x32xf32>
    %104 = arith.mulf %101, %103 : vector<16x32xf32>
    %105 = vector.extract_strided_slice %43 {offsets = [64, 0], sizes = [32, 128], strides = [1, 1]} : vector<128x128xf32> to vector<32x128xf32>
    %cst_35 = arith.constant dense<0.000000e+00> : vector<16x128xf32>
    %106 = tpu.matmul %104, %105, %cst_35 {dimension_numbers = #tpu.dot_dimension_numbers<[1], [0], [0], [1], [0, 0, 1, 1], [], []>} : vector<16x32xf32>, vector<32x128xf32>, vector<16x128xf32> -> vector<16x128xf32>
    %107 = arith.addf %87, %106 : vector<16x128xf32>
    %108 = vector.extract_strided_slice %44 {offsets = [0, 96], sizes = [16, 32], strides = [1, 1]} : vector<16x128xf32> to vector<16x32xf32>
    %109 = vector.extract_strided_slice %45 {offsets = [0, 96], sizes = [16, 32], strides = [1, 1]} : vector<16x128xf32> to vector<16x32xf32>
    %110 = vector.extract_strided_slice %46 {offsets = [0, 96], sizes = [16, 32], strides = [1, 1]} : vector<16x128xf32> to vector<16x32xf32>
    %111 = tpu.transpose %109, [1, 0] : vector<16x32xf32> -> vector<32x16xf32>
    %cst_36 = arith.constant dense<0.000000e+00> : vector<16x16xf32>
    %112 = tpu.matmul %108, %111, %cst_36 {dimension_numbers = #tpu.dot_dimension_numbers<[1], [0], [0], [1], [0, 0, 1, 1], [], []>} : vector<16x32xf32>, vector<32x16xf32>, vector<16x16xf32> -> vector<16x16xf32>
    %113 = arith.addf %112, %42 : vector<16x16xf32>
    %cst_37 = arith.constant dense<0xFF800000> : vector<16xf32>
    %114 = vector.multi_reduction <maximumf>, %113, %cst_37 [1] : vector<16x16xf32> to vector<16xf32>
    %115 = vector.shape_cast %114 : vector<16xf32> to vector<16x1xf32>
    %116 = vector.broadcast %115 : vector<16x1xf32> to vector<16x16xf32>
    %117 = arith.subf %113, %116 : vector<16x16xf32>
    %118 = math.exp %117 : vector<16x16xf32>
    %cst_38 = arith.constant dense<0.000000e+00> : vector<16xf32>
    %119 = vector.multi_reduction <add>, %118, %cst_38 [1] : vector<16x16xf32> to vector<16xf32>
    %120 = vector.shape_cast %119 : vector<16xf32> to vector<16x1xf32>
    %cst_39 = arith.constant dense<0.000000e+00> : vector<16x32xf32>
    %121 = tpu.matmul %118, %110, %cst_39 {dimension_numbers = #tpu.dot_dimension_numbers<[1], [0], [0], [1], [0, 0, 1, 1], [], []>} : vector<16x16xf32>, vector<16x32xf32>, vector<16x32xf32> -> vector<16x32xf32>
    %122 = tpu.reciprocal %120 {approx = true} : vector<16x1xf32> -> vector<16x1xf32>
    %123 = vector.broadcast %122 : vector<16x1xf32> to vector<16x32xf32>
    %124 = arith.mulf %121, %123 : vector<16x32xf32>
    %125 = vector.extract_strided_slice %43 {offsets = [96, 0], sizes = [32, 128], strides = [1, 1]} : vector<128x128xf32> to vector<32x128xf32>
    %cst_40 = arith.constant dense<0.000000e+00> : vector<16x128xf32>
    %126 = tpu.matmul %124, %125, %cst_40 {dimension_numbers = #tpu.dot_dimension_numbers<[1], [0], [0], [1], [0, 0, 1, 1], [], []>} : vector<16x32xf32>, vector<32x128xf32>, vector<16x128xf32> -> vector<16x128xf32>
    %127 = arith.addf %107, %126 : vector<16x128xf32>
    %128 = vector.extract_strided_slice %30 {offsets = [16, 0], sizes = [16, 128], strides = [1, 1]} : vector<32x128xf32> to vector<16x128xf32>
    %129 = vector.extract_strided_slice %31 {offsets = [16, 0], sizes = [16, 128], strides = [1, 1]} : vector<32x128xf32> to vector<16x128xf32>
    %130 = vector.extract_strided_slice %32 {offsets = [16, 0], sizes = [16, 128], strides = [1, 1]} : vector<32x128xf32> to vector<16x128xf32>
    %cst_41 = arith.constant 0.000000e+00 : f32
    %131 = vector.broadcast %cst_41 : f32 to vector<16x128xf32>
    %132 = vector.extract_strided_slice %128 {offsets = [0, 0], sizes = [16, 32], strides = [1, 1]} : vector<16x128xf32> to vector<16x32xf32>
    %133 = vector.extract_strided_slice %129 {offsets = [0, 0], sizes = [16, 32], strides = [1, 1]} : vector<16x128xf32> to vector<16x32xf32>
    %134 = vector.extract_strided_slice %130 {offsets = [0, 0], sizes = [16, 32], strides = [1, 1]} : vector<16x128xf32> to vector<16x32xf32>
    %135 = tpu.transpose %133, [1, 0] : vector<16x32xf32> -> vector<32x16xf32>
    %cst_42 = arith.constant dense<0.000000e+00> : vector<16x16xf32>
    %136 = tpu.matmul %132, %135, %cst_42 {dimension_numbers = #tpu.dot_dimension_numbers<[1], [0], [0], [1], [0, 0, 1, 1], [], []>} : vector<16x32xf32>, vector<32x16xf32>, vector<16x16xf32> -> vector<16x16xf32>
    %137 = arith.addf %136, %42 : vector<16x16xf32>
    %cst_43 = arith.constant dense<0xFF800000> : vector<16xf32>
    %138 = vector.multi_reduction <maximumf>, %137, %cst_43 [1] : vector<16x16xf32> to vector<16xf32>
    %139 = vector.shape_cast %138 : vector<16xf32> to vector<16x1xf32>
    %140 = vector.broadcast %139 : vector<16x1xf32> to vector<16x16xf32>
    %141 = arith.subf %137, %140 : vector<16x16xf32>
    %142 = math.exp %141 : vector<16x16xf32>
    %cst_44 = arith.constant dense<0.000000e+00> : vector<16xf32>
    %143 = vector.multi_reduction <add>, %142, %cst_44 [1] : vector<16x16xf32> to vector<16xf32>
    %144 = vector.shape_cast %143 : vector<16xf32> to vector<16x1xf32>
    %cst_45 = arith.constant dense<0.000000e+00> : vector<16x32xf32>
    %145 = tpu.matmul %142, %134, %cst_45 {dimension_numbers = #tpu.dot_dimension_numbers<[1], [0], [0], [1], [0, 0, 1, 1], [], []>} : vector<16x16xf32>, vector<16x32xf32>, vector<16x32xf32> -> vector<16x32xf32>
    %146 = tpu.reciprocal %144 {approx = true} : vector<16x1xf32> -> vector<16x1xf32>
    %147 = vector.broadcast %146 : vector<16x1xf32> to vector<16x32xf32>
    %148 = arith.mulf %145, %147 : vector<16x32xf32>
    %149 = vector.extract_strided_slice %43 {offsets = [0, 0], sizes = [32, 128], strides = [1, 1]} : vector<128x128xf32> to vector<32x128xf32>
    %cst_46 = arith.constant dense<0.000000e+00> : vector<16x128xf32>
    %150 = tpu.matmul %148, %149, %cst_46 {dimension_numbers = #tpu.dot_dimension_numbers<[1], [0], [0], [1], [0, 0, 1, 1], [], []>} : vector<16x32xf32>, vector<32x128xf32>, vector<16x128xf32> -> vector<16x128xf32>
    %151 = arith.addf %131, %150 : vector<16x128xf32>
    %152 = vector.extract_strided_slice %128 {offsets = [0, 32], sizes = [16, 32], strides = [1, 1]} : vector<16x128xf32> to vector<16x32xf32>
    %153 = vector.extract_strided_slice %129 {offsets = [0, 32], sizes = [16, 32], strides = [1, 1]} : vector<16x128xf32> to vector<16x32xf32>
    %154 = vector.extract_strided_slice %130 {offsets = [0, 32], sizes = [16, 32], strides = [1, 1]} : vector<16x128xf32> to vector<16x32xf32>
    %155 = tpu.transpose %153, [1, 0] : vector<16x32xf32> -> vector<32x16xf32>
    %cst_47 = arith.constant dense<0.000000e+00> : vector<16x16xf32>
    %156 = tpu.matmul %152, %155, %cst_47 {dimension_numbers = #tpu.dot_dimension_numbers<[1], [0], [0], [1], [0, 0, 1, 1], [], []>} : vector<16x32xf32>, vector<32x16xf32>, vector<16x16xf32> -> vector<16x16xf32>
    %157 = arith.addf %156, %42 : vector<16x16xf32>
    %cst_48 = arith.constant dense<0xFF800000> : vector<16xf32>
    %158 = vector.multi_reduction <maximumf>, %157, %cst_48 [1] : vector<16x16xf32> to vector<16xf32>
    %159 = vector.shape_cast %158 : vector<16xf32> to vector<16x1xf32>
    %160 = vector.broadcast %159 : vector<16x1xf32> to vector<16x16xf32>
    %161 = arith.subf %157, %160 : vector<16x16xf32>
    %162 = math.exp %161 : vector<16x16xf32>
    %cst_49 = arith.constant dense<0.000000e+00> : vector<16xf32>
    %163 = vector.multi_reduction <add>, %162, %cst_49 [1] : vector<16x16xf32> to vector<16xf32>
    %164 = vector.shape_cast %163 : vector<16xf32> to vector<16x1xf32>
    %cst_50 = arith.constant dense<0.000000e+00> : vector<16x32xf32>
    %165 = tpu.matmul %162, %154, %cst_50 {dimension_numbers = #tpu.dot_dimension_numbers<[1], [0], [0], [1], [0, 0, 1, 1], [], []>} : vector<16x16xf32>, vector<16x32xf32>, vector<16x32xf32> -> vector<16x32xf32>
    %166 = tpu.reciprocal %164 {approx = true} : vector<16x1xf32> -> vector<16x1xf32>
    %167 = vector.broadcast %166 : vector<16x1xf32> to vector<16x32xf32>
    %168 = arith.mulf %165, %167 : vector<16x32xf32>
    %169 = vector.extract_strided_slice %43 {offsets = [32, 0], sizes = [32, 128], strides = [1, 1]} : vector<128x128xf32> to vector<32x128xf32>
    %cst_51 = arith.constant dense<0.000000e+00> : vector<16x128xf32>
    %170 = tpu.matmul %168, %169, %cst_51 {dimension_numbers = #tpu.dot_dimension_numbers<[1], [0], [0], [1], [0, 0, 1, 1], [], []>} : vector<16x32xf32>, vector<32x128xf32>, vector<16x128xf32> -> vector<16x128xf32>
    %171 = arith.addf %151, %170 : vector<16x128xf32>
    %172 = vector.extract_strided_slice %128 {offsets = [0, 64], sizes = [16, 32], strides = [1, 1]} : vector<16x128xf32> to vector<16x32xf32>
    %173 = vector.extract_strided_slice %129 {offsets = [0, 64], sizes = [16, 32], strides = [1, 1]} : vector<16x128xf32> to vector<16x32xf32>
    %174 = vector.extract_strided_slice %130 {offsets = [0, 64], sizes = [16, 32], strides = [1, 1]} : vector<16x128xf32> to vector<16x32xf32>
    %175 = tpu.transpose %173, [1, 0] : vector<16x32xf32> -> vector<32x16xf32>
    %cst_52 = arith.constant dense<0.000000e+00> : vector<16x16xf32>
    %176 = tpu.matmul %172, %175, %cst_52 {dimension_numbers = #tpu.dot_dimension_numbers<[1], [0], [0], [1], [0, 0, 1, 1], [], []>} : vector<16x32xf32>, vector<32x16xf32>, vector<16x16xf32> -> vector<16x16xf32>
    %177 = arith.addf %176, %42 : vector<16x16xf32>
    %cst_53 = arith.constant dense<0xFF800000> : vector<16xf32>
    %178 = vector.multi_reduction <maximumf>, %177, %cst_53 [1] : vector<16x16xf32> to vector<16xf32>
    %179 = vector.shape_cast %178 : vector<16xf32> to vector<16x1xf32>
    %180 = vector.broadcast %179 : vector<16x1xf32> to vector<16x16xf32>
    %181 = arith.subf %177, %180 : vector<16x16xf32>
    %182 = math.exp %181 : vector<16x16xf32>
    %cst_54 = arith.constant dense<0.000000e+00> : vector<16xf32>
    %183 = vector.multi_reduction <add>, %182, %cst_54 [1] : vector<16x16xf32> to vector<16xf32>
    %184 = vector.shape_cast %183 : vector<16xf32> to vector<16x1xf32>
    %cst_55 = arith.constant dense<0.000000e+00> : vector<16x32xf32>
    %185 = tpu.matmul %182, %174, %cst_55 {dimension_numbers = #tpu.dot_dimension_numbers<[1], [0], [0], [1], [0, 0, 1, 1], [], []>} : vector<16x16xf32>, vector<16x32xf32>, vector<16x32xf32> -> vector<16x32xf32>
    %186 = tpu.reciprocal %184 {approx = true} : vector<16x1xf32> -> vector<16x1xf32>
    %187 = vector.broadcast %186 : vector<16x1xf32> to vector<16x32xf32>
    %188 = arith.mulf %185, %187 : vector<16x32xf32>
    %189 = vector.extract_strided_slice %43 {offsets = [64, 0], sizes = [32, 128], strides = [1, 1]} : vector<128x128xf32> to vector<32x128xf32>
    %cst_56 = arith.constant dense<0.000000e+00> : vector<16x128xf32>
    %190 = tpu.matmul %188, %189, %cst_56 {dimension_numbers = #tpu.dot_dimension_numbers<[1], [0], [0], [1], [0, 0, 1, 1], [], []>} : vector<16x32xf32>, vector<32x128xf32>, vector<16x128xf32> -> vector<16x128xf32>
    %191 = arith.addf %171, %190 : vector<16x128xf32>
    %192 = vector.extract_strided_slice %128 {offsets = [0, 96], sizes = [16, 32], strides = [1, 1]} : vector<16x128xf32> to vector<16x32xf32>
    %193 = vector.extract_strided_slice %129 {offsets = [0, 96], sizes = [16, 32], strides = [1, 1]} : vector<16x128xf32> to vector<16x32xf32>
    %194 = vector.extract_strided_slice %130 {offsets = [0, 96], sizes = [16, 32], strides = [1, 1]} : vector<16x128xf32> to vector<16x32xf32>
    %195 = tpu.transpose %193, [1, 0] : vector<16x32xf32> -> vector<32x16xf32>
    %cst_57 = arith.constant dense<0.000000e+00> : vector<16x16xf32>
    %196 = tpu.matmul %192, %195, %cst_57 {dimension_numbers = #tpu.dot_dimension_numbers<[1], [0], [0], [1], [0, 0, 1, 1], [], []>} : vector<16x32xf32>, vector<32x16xf32>, vector<16x16xf32> -> vector<16x16xf32>
    %197 = arith.addf %196, %42 : vector<16x16xf32>
    %cst_58 = arith.constant dense<0xFF800000> : vector<16xf32>
    %198 = vector.multi_reduction <maximumf>, %197, %cst_58 [1] : vector<16x16xf32> to vector<16xf32>
    %199 = vector.shape_cast %198 : vector<16xf32> to vector<16x1xf32>
    %200 = vector.broadcast %199 : vector<16x1xf32> to vector<16x16xf32>
    %201 = arith.subf %197, %200 : vector<16x16xf32>
    %202 = math.exp %201 : vector<16x16xf32>
    %cst_59 = arith.constant dense<0.000000e+00> : vector<16xf32>
    %203 = vector.multi_reduction <add>, %202, %cst_59 [1] : vector<16x16xf32> to vector<16xf32>
    %204 = vector.shape_cast %203 : vector<16xf32> to vector<16x1xf32>
    %cst_60 = arith.constant dense<0.000000e+00> : vector<16x32xf32>
    %205 = tpu.matmul %202, %194, %cst_60 {dimension_numbers = #tpu.dot_dimension_numbers<[1], [0], [0], [1], [0, 0, 1, 1], [], []>} : vector<16x16xf32>, vector<16x32xf32>, vector<16x32xf32> -> vector<16x32xf32>
    %206 = tpu.reciprocal %204 {approx = true} : vector<16x1xf32> -> vector<16x1xf32>
    %207 = vector.broadcast %206 : vector<16x1xf32> to vector<16x32xf32>
    %208 = arith.mulf %205, %207 : vector<16x32xf32>
    %209 = vector.extract_strided_slice %43 {offsets = [96, 0], sizes = [32, 128], strides = [1, 1]} : vector<128x128xf32> to vector<32x128xf32>
    %cst_61 = arith.constant dense<0.000000e+00> : vector<16x128xf32>
    %210 = tpu.matmul %208, %209, %cst_61 {dimension_numbers = #tpu.dot_dimension_numbers<[1], [0], [0], [1], [0, 0, 1, 1], [], []>} : vector<16x32xf32>, vector<32x128xf32>, vector<16x128xf32> -> vector<16x128xf32>
    %211 = arith.addf %191, %210 : vector<16x128xf32>
    %212 = tpu.concatenate %127, %211 in 0 : vector<16x128xf32>, vector<16x128xf32> -> vector<32x128xf32>
    %c0_62 = arith.constant 0 : index
    %c0_63 = arith.constant 0 : index
    %213 = vector.load %arg7[%c0_62, %c0_63] : memref<1x128xf32, #tpu.memory_space<vmem>>, vector<1x128xf32>
    %214 = vector.broadcast %213 : vector<1x128xf32> to vector<32x128xf32>
    %215 = arith.addf %212, %214 : vector<32x128xf32>
    %216 = arith.addf %0, %215 : vector<32x128xf32>
    %c0_64 = arith.constant 0 : index
    %c0_65 = arith.constant 0 : index
    %217 = vector.load %arg8[%c0_64, %c0_65] : memref<1x128xf32, #tpu.memory_space<vmem>>, vector<1x128xf32>
    %c0_66 = arith.constant 0 : index
    %c0_67 = arith.constant 0 : index
    %218 = vector.load %arg9[%c0_66, %c0_67] : memref<1x128xf32, #tpu.memory_space<vmem>>, vector<1x128xf32>
    %cst_68 = arith.constant dense<0.000000e+00> : vector<32xf32>
    %219 = vector.multi_reduction <add>, %216, %cst_68 [1] : vector<32x128xf32> to vector<32xf32>
    %220 = vector.shape_cast %219 : vector<32xf32> to vector<32x1xf32>
    %cst_69 = arith.constant 1.280000e+02 : f32
    %221 = vector.broadcast %cst_69 : f32 to vector<32x1xf32>
    %222 = arith.divf %220, %221 : vector<32x1xf32>
    %223 = vector.broadcast %222 : vector<32x1xf32> to vector<32x128xf32>
    %224 = arith.subf %216, %223 : vector<32x128xf32>
    %225 = arith.mulf %224, %224 : vector<32x128xf32>
    %cst_70 = arith.constant dense<0.000000e+00> : vector<32xf32>
    %226 = vector.multi_reduction <add>, %225, %cst_70 [1] : vector<32x128xf32> to vector<32xf32>
    %227 = vector.shape_cast %226 : vector<32xf32> to vector<32x1xf32>
    %cst_71 = arith.constant 1.280000e+02 : f32
    %228 = vector.broadcast %cst_71 : f32 to vector<32x1xf32>
    %229 = arith.divf %227, %228 : vector<32x1xf32>
    %cst_72 = arith.constant 9.99999974E-6 : f32
    %230 = vector.broadcast %cst_72 : f32 to vector<32x1xf32>
    %231 = arith.addf %229, %230 : vector<32x1xf32>
    %232 = math.rsqrt %231 : vector<32x1xf32>
    %233 = vector.broadcast %232 : vector<32x1xf32> to vector<32x128xf32>
    %234 = arith.mulf %224, %233 : vector<32x128xf32>
    %235 = vector.broadcast %217 : vector<1x128xf32> to vector<32x128xf32>
    %236 = arith.mulf %234, %235 : vector<32x128xf32>
    %237 = vector.broadcast %218 : vector<1x128xf32> to vector<32x128xf32>
    %238 = arith.addf %236, %237 : vector<32x128xf32>
    %c0_73 = arith.constant 0 : index
    %c0_74 = arith.constant 0 : index
    %239 = vector.load %arg10[%c0_73, %c0_74] : memref<128x512xf32, #tpu.memory_space<vmem>>, vector<128x512xf32>
    %cst_75 = arith.constant dense<0.000000e+00> : vector<32x512xf32>
    %240 = tpu.matmul %238, %239, %cst_75 {dimension_numbers = #tpu.dot_dimension_numbers<[1], [0], [0], [1], [0, 0, 1, 1], [], []>} : vector<32x128xf32>, vector<128x512xf32>, vector<32x512xf32> -> vector<32x512xf32>
    %c0_76 = arith.constant 0 : index
    %c0_77 = arith.constant 0 : index
    %241 = vector.load %arg11[%c0_76, %c0_77] : memref<1x512xf32, #tpu.memory_space<vmem>>, vector<1x512xf32>
    %242 = vector.broadcast %241 : vector<1x512xf32> to vector<32x512xf32>
    %243 = arith.addf %240, %242 : vector<32x512xf32>
    %cst_78 = arith.constant 5.000000e-01 : f32
    %244 = vector.broadcast %cst_78 : f32 to vector<32x512xf32>
    %245 = arith.mulf %244, %243 : vector<32x512xf32>
    %cst_79 = arith.constant 4.471500e-02 : f32
    %246 = vector.broadcast %cst_79 : f32 to vector<32x512xf32>
    %247 = arith.mulf %246, %243 : vector<32x512xf32>
    %248 = arith.mulf %247, %243 : vector<32x512xf32>
    %249 = arith.mulf %248, %243 : vector<32x512xf32>
    %250 = arith.addf %243, %249 : vector<32x512xf32>
    %cst_80 = arith.constant 0.797884583 : f32
    %251 = vector.broadcast %cst_80 : f32 to vector<32x512xf32>
    %252 = arith.mulf %251, %250 : vector<32x512xf32>
    %253 = math.tanh %252 : vector<32x512xf32>
    %cst_81 = arith.constant 1.000000e+00 : f32
    %254 = vector.broadcast %cst_81 : f32 to vector<32x512xf32>
    %255 = arith.addf %254, %253 : vector<32x512xf32>
    %256 = arith.mulf %245, %255 : vector<32x512xf32>
    %c0_82 = arith.constant 0 : index
    %c0_83 = arith.constant 0 : index
    %257 = vector.load %arg12[%c0_82, %c0_83] : memref<512x128xf32, #tpu.memory_space<vmem>>, vector<512x128xf32>
    %cst_84 = arith.constant dense<0.000000e+00> : vector<32x128xf32>
    %258 = tpu.matmul %256, %257, %cst_84 {dimension_numbers = #tpu.dot_dimension_numbers<[1], [0], [0], [1], [0, 0, 1, 1], [], []>} : vector<32x512xf32>, vector<512x128xf32>, vector<32x128xf32> -> vector<32x128xf32>
    %c0_85 = arith.constant 0 : index
    %c0_86 = arith.constant 0 : index
    %259 = vector.load %arg13[%c0_85, %c0_86] : memref<1x128xf32, #tpu.memory_space<vmem>>, vector<1x128xf32>
    %260 = vector.broadcast %259 : vector<1x128xf32> to vector<32x128xf32>
    %261 = arith.addf %258, %260 : vector<32x128xf32>
    %262 = arith.addf %216, %261 : vector<32x128xf32>
    %c0_87 = arith.constant 0 : index
    %c0_88 = arith.constant 0 : index
    %263 = vector.load %arg14[%c0_87, %c0_88] : memref<32x128xf32, #tpu.memory_space<vmem>>, vector<32x128xf32>
    tpu.vector_store %arg14[%c0_87, %c0_88], %262 {strides = array<i32>} : memref<32x128xf32, #tpu.memory_space<vmem>>, vector<32x128xf32>,
    return
  }
  func.func @transform_0(%arg0: i32) -> (i32, i32) {
    %c0_i32 = arith.constant 0 : i32
    %c0_i32_0 = arith.constant 0 : i32
    %c0_i32_1 = arith.constant 0 : i32
    return %c0_i32, %c0_i32_0 : i32, i32
  }
  func.func @transform_1(%arg0: i32) -> (i32, i32) {
    %c0_i32 = arith.constant 0 : i32
    %c0_i32_0 = arith.constant 0 : i32
    %c0_i32_1 = arith.constant 0 : i32
    return %c0_i32, %c0_i32_0 : i32, i32
  }
  func.func @transform_2(%arg0: i32) -> (i32, i32) {
    %c0_i32 = arith.constant 0 : i32
    %c0_i32_0 = arith.constant 0 : i32
    %c0_i32_1 = arith.constant 0 : i32
    return %c0_i32, %c0_i32_0 : i32, i32
  }
  func.func @transform_3(%arg0: i32) -> (i32, i32) {
    %c0_i32 = arith.constant 0 : i32
    %c0_i32_0 = arith.constant 0 : i32
    %c0_i32_1 = arith.constant 0 : i32
    return %c0_i32, %c0_i32_0 : i32, i32
  }
  func.func @transform_4(%arg0: i32) -> (i32, i32) {
    %c0_i32 = arith.constant 0 : i32
    %c0_i32_0 = arith.constant 0 : i32
    %c0_i32_1 = arith.constant 0 : i32
    return %c0_i32, %c0_i32_0 : i32, i32
  }
  func.func @transform_5(%arg0: i32) -> (i32, i32) {
    %c0_i32 = arith.constant 0 : i32
    %c0_i32_0 = arith.constant 0 : i32
    %c0_i32_1 = arith.constant 0 : i32
    return %c0_i32, %c0_i32_0 : i32, i32
  }
  func.func @transform_6(%arg0: i32) -> (i32, i32) {
    %c0_i32 = arith.constant 0 : i32
    %c0_i32_0 = arith.constant 0 : i32
    %c0_i32_1 = arith.constant 0 : i32
    return %c0_i32, %c0_i32_0 : i32, i32
  }
  func.func @transform_7(%arg0: i32) -> (i32, i32) {
    %c0_i32 = arith.constant 0 : i32
    %c0_i32_0 = arith.constant 0 : i32
    %c0_i32_1 = arith.constant 0 : i32
    return %c0_i32, %c0_i32_0 : i32, i32
  }
  func.func @transform_8(%arg0: i32) -> (i32, i32) {
    %c0_i32 = arith.constant 0 : i32
    %c0_i32_0 = arith.constant 0 : i32
    %c0_i32_1 = arith.constant 0 : i32
    return %c0_i32, %c0_i32_0 : i32, i32
  }
  func.func @transform_9(%arg0: i32) -> (i32, i32) {
    %c0_i32 = arith.constant 0 : i32
    %c0_i32_0 = arith.constant 0 : i32
    %c0_i32_1 = arith.constant 0 : i32
    return %c0_i32, %c0_i32_0 : i32, i32
  }
  func.func @transform_10(%arg0: i32) -> (i32, i32) {
    %c0_i32 = arith.constant 0 : i32
    %c0_i32_0 = arith.constant 0 : i32
    %c0_i32_1 = arith.constant 0 : i32
    return %c0_i32, %c0_i32_0 : i32, i32
  }
  func.func @transform_11(%arg0: i32) -> (i32, i32) {
    %c0_i32 = arith.constant 0 : i32
    %c0_i32_0 = arith.constant 0 : i32
    %c0_i32_1 = arith.constant 0 : i32
    return %c0_i32, %c0_i32_0 : i32, i32
  }
  func.func @transform_12(%arg0: i32) -> (i32, i32) {
    %c0_i32 = arith.constant 0 : i32
    %c0_i32_0 = arith.constant 0 : i32
    %c0_i32_1 = arith.constant 0 : i32
    return %c0_i32, %c0_i32_0 : i32, i32
  }
  func.func @transform_13(%arg0: i32) -> (i32, i32) {
    %c0_i32 = arith.constant 0 : i32
    %c0_i32_0 = arith.constant 0 : i32
    %c0_i32_1 = arith.constant 0 : i32
    return %c0_i32, %c0_i32_0 : i32, i32
  }
}

</mosaic_0001>

<llo_original>
// kernel: tpu_custom_call.1
$region0: #{tpu_custom_call.1}
  #allocation0 [shape = 'u32[]', space=smem, size = 0x4, offset = 0x4, fixed_abs, tag = 'smem constant byte address 0x4 - core index']
  #allocation1 [shape = 'u32[72,128]{1,0:T(1,128)}', space=vmem, size = 0x9000, scoped, tag = 'internal scratch']
  %s0 = inlined_call_operand.hbm [shape: f32[32,128], index: 0, kind: input, shape index: {}]
  %s1 = inlined_call_operand.hbm [shape: f32[1,128], index: 1, kind: input, shape index: {}]
  %s2 = inlined_call_operand.hbm [shape: f32[1,128], index: 2, kind: input, shape index: {}]
  %s3 = inlined_call_operand.hbm [shape: f32[128,384], index: 3, kind: input, shape index: {}]
  %s4 = inlined_call_operand.vmem [shape: f32[1,384], index: 4, kind: input, shape index: {}]
  %s5 = inlined_call_operand.hbm [shape: f32[128,128], index: 5, kind: input, shape index: {}]
  %s6 = inlined_call_operand.hbm [shape: f32[1,128], index: 6, kind: input, shape index: {}]
  %s7 = inlined_call_operand.hbm [shape: f32[1,128], index: 7, kind: input, shape index: {}]
  %s8 = inlined_call_operand.hbm [shape: f32[1,128], index: 8, kind: input, shape index: {}]
  %s9 = inlined_call_operand.hbm [shape: f32[128,512], index: 9, kind: input, shape index: {}]
  %s10 = inlined_call_operand.vmem [shape: f32[1,512], index: 10, kind: input, shape index: {}]
  %s11 = inlined_call_operand.hbm [shape: f32[512,128], index: 11, kind: input, shape index: {}]
  %s12 = inlined_call_operand.vmem [shape: f32[1,128], index: 12, kind: input, shape index: {}]
  %s13 = inlined_call_operand.hbm [shape: f32[32,128], index: 13, kind: output, shape index: {}]
  %s14 = sld [smem:[#allocation0]]
  $region102: #{tpu_custom_call.1} parent=0
    _
  %s16 = ssub.s32 1, %s14
  %s17 = scalar_select 0, %s16, %s14
  $region1: #{tpu_custom_call.1} parent=0
    #allocation2 [shape = 'u8[16384]{0}', space=vmem, size = 0x4000, scoped, tag = 'input window, operand 0, single buffered']
    #allocation3 [shape = 's32[1]{0}', space=sflag, size = 0x4, scoped, tag = 'scoped memory for tpu_custom_call.1']
    #allocation4 [shape = 's32[1]{0}', space=sflag, size = 0x4, scoped, tag = 'scoped memory for tpu_custom_call.1']
    #allocation5 [shape = 'u8[512]{0}', space=vmem, size = 0x400, scoped, tag = 'input window, operand 1, single buffered']
    #allocation6 [shape = 's32[1]{0}', space=sflag, size = 0x4, scoped, tag = 'scoped memory for tpu_custom_call.1']
    #allocation7 [shape = 'u8[512]{0}', space=vmem, size = 0x400, scoped, tag = 'input window, operand 2, single buffered']
    #allocation8 [shape = 'u8[196608]{0}', space=vmem, size = 0x30000, scoped, tag = 'input window, operand 3, single buffered']
    #allocation9 [shape = 's32[1]{0}', space=sflag, size = 0x4, scoped, tag = 'scoped memory for tpu_custom_call.1']
    #allocation10 [shape = 'u8[65536]{0}', space=vmem, size = 0x10000, scoped, tag = 'input window, operand 5, single buffered']
    #allocation11 [shape = 'u8[512]{0}', space=vmem, size = 0x400, scoped, tag = 'input window, operand 6, single buffered']
    #allocation12 [shape = 's32[1]{0}', space=sflag, size = 0x4, scoped, tag = 'scoped memory for tpu_custom_call.1']
    #allocation13 [shape = 'u8[512]{0}', space=vmem, size = 0x400, scoped, tag = 'input window, operand 7, single buffered']
    #allocation14 [shape = 'u8[512]{0}', space=vmem, size = 0x400, scoped, tag = 'input window, operand 8, single buffered']
    #allocation15 [shape = 's32[1]{0}', space=sflag, size = 0x4, scoped, tag = 'scoped memory for tpu_custom_call.1']
    #allocation16 [shape = 'u8[262144]{0}', space=vmem, size = 0x40000, scoped, tag = 'input window, operand 9, single buffered']
    #allocation17 [shape = 'u8[262144]{0}', space=vmem, size = 0x40000, scoped, tag = 'input window, operand 11, single buffered']
    #allocation18 [shape = 's32[1]{0}', space=sflag, size = 0x4, scoped, tag = 'scoped memory for tpu_custom_call.1']
    #allocation19 [shape = 'u8[16384]{0}', space=vmem, size = 0x4000, scoped, tag = 'output window, operand 0, single buffered']
    %18 = vsyncpa [#allocation3], 0
    %19 = vsyncpa [#allocation6], 0
    %20 = vsyncpa [#allocation9], 0
    %21 = vsyncpa [#allocation12], 0
    %22 = vsyncpa [#allocation15], 0
    %23 = vsyncpa [#allocation18], 0
    %24 = vsyncpa [#allocation4], 0
    // Predicated region
    $region2: #{tpu_custom_call.1} parent=1 // pred_check
      _
    $region3: #{tpu_custom_call.1} parent=1 // pred_check_branch
      %26 = sbr.rel (0) target = $region5
    $region4: #{tpu_custom_call.1} parent=1 // pred_region
      %28 = vsyncadd [#allocation3], 0
      %s29 = sshll.u32 %s0, 4
      %s30 = int_to_ptr.hbm [resolvable:$true] %s29
      %s31 = sshll.u32 [#allocation2], 4
      %s32 = int_to_ptr.vmem [resolvable:$true] %s31
      %37 = dma.hbm_to_vmem [thread:$0]  %s30, 512, %s32, [#allocation3], 128, 128, 8
    $region5: #{tpu_custom_call.1} parent=1 // pred_fallthru
      _
    // Predicated region
    $region6: #{tpu_custom_call.1} parent=1 // pred_check
      _
    $region7: #{tpu_custom_call.1} parent=1 // pred_check_branch
      %39 = sbr.rel (0) target = $region9
    $region8: #{tpu_custom_call.1} parent=1 // pred_region
      %41 = vsyncadd [#allocation6], 0
      %s43 = sshll.u32 %s1, 4
      %s44 = int_to_ptr.hbm [resolvable:$true] %s43
      %s45 = sshll.u32 [#allocation5], 4
      %s46 = int_to_ptr.vmem [resolvable:$true] %s45
      %48 = dma.hbm_to_vmem [thread:$0]  %s44, 16, %s46, [#allocation6]
    $region9: #{tpu_custom_call.1} parent=1 // pred_fallthru
      _
    // Predicated region
    $region10: #{tpu_custom_call.1} parent=1 // pred_check
      _
    $region11: #{tpu_custom_call.1} parent=1 // pred_check_branch
      %50 = sbr.rel (0) target = $region13
    $region12: #{tpu_custom_call.1} parent=1 // pred_region
      %52 = vsyncadd [#allocation6], 0
      %s54 = sshll.u32 %s2, 4
      %s55 = int_to_ptr.hbm [resolvable:$true] %s54
      %s56 = sshll.u32 [#allocation7], 4
      %s57 = int_to_ptr.vmem [resolvable:$true] %s56
      %59 = dma.hbm_to_vmem [thread:$0]  %s55, 16, %s57, [#allocation6]
    $region13: #{tpu_custom_call.1} parent=1 // pred_fallthru
      _
    // Predicated region
    $region14: #{tpu_custom_call.1} parent=1 // pred_check
      _
    $region15: #{tpu_custom_call.1} parent=1 // pred_check_branch
      %61 = sbr.rel (0) target = $region17
    $region16: #{tpu_custom_call.1} parent=1 // pred_region
      %63 = vsyncadd [#allocation9], 0
      %s64 = sshll.u32 %s3, 4
      %s65 = int_to_ptr.hbm [resolvable:$true] %s64
      %s66 = sshll.u32 [#allocation8], 4
      %s67 = int_to_ptr.vmem [resolvable:$true] %s66
      %72 = dma.hbm_to_vmem [thread:$0]  %s65, 6144, %s67, [#allocation9], 384, 384, 24
    $region17: #{tpu_custom_call.1} parent=1 // pred_fallthru
      _
    // Predicated region
    $region18: #{tpu_custom_call.1} parent=1 // pred_check
      _
    $region19: #{tpu_custom_call.1} parent=1 // pred_check_branch
      %74 = sbr.rel (0) target = $region21
    $region20: #{tpu_custom_call.1} parent=1 // pred_region
      _
    $region21: #{tpu_custom_call.1} parent=1 // pred_fallthru
      _
    // Predicated region
    $region22: #{tpu_custom_call.1} parent=1 // pred_check
      _
    $region23: #{tpu_custom_call.1} parent=1 // pred_check_branch
      %76 = sbr.rel (0) target = $region25
    $region24: #{tpu_custom_call.1} parent=1 // pred_region
      %78 = vsyncadd [#allocation9], 0
      %s79 = sshll.u32 %s5, 4
      %s80 = int_to_ptr.hbm [resolvable:$true] %s79
      %s81 = sshll.u32 [#allocation10], 4
      %s82 = int_to_ptr.vmem [resolvable:$true] %s81
      %87 = dma.hbm_to_vmem [thread:$0]  %s80, 2048, %s82, [#allocation9], 128, 128, 8
    $region25: #{tpu_custom_call.1} parent=1 // pred_fallthru
      _
    // Predicated region
    $region26: #{tpu_custom_call.1} parent=1 // pred_check
      _
    $region27: #{tpu_custom_call.1} parent=1 // pred_check_branch
      %89 = sbr.rel (0) target = $region29
    $region28: #{tpu_custom_call.1} parent=1 // pred_region
      %91 = vsyncadd [#allocation12], 0
      %s93 = sshll.u32 %s6, 4
      %s94 = int_to_ptr.hbm [resolvable:$true] %s93
      %s95 = sshll.u32 [#allocation11], 4
      %s96 = int_to_ptr.vmem [resolvable:$true] %s95
      %98 = dma.hbm_to_vmem [thread:$0]  %s94, 16, %s96, [#allocation12]
    $region29: #{tpu_custom_call.1} parent=1 // pred_fallthru
      _
    // Predicated region
    $region30: #{tpu_custom_call.1} parent=1 // pred_check
      _
    $region31: #{tpu_custom_call.1} parent=1 // pred_check_branch
      %100 = sbr.rel (0) target = $region33
    $region32: #{tpu_custom_call.1} parent=1 // pred_region
      %102 = vsyncadd [#allocation12], 0
      %s104 = sshll.u32 %s7, 4
      %s105 = int_to_ptr.hbm [resolvable:$true] %s104
      %s106 = sshll.u32 [#allocation13], 4
      %s107 = int_to_ptr.vmem [resolvable:$true] %s106
      %109 = dma.hbm_to_vmem [thread:$0]  %s105, 16, %s107, [#allocation12]
    $region33: #{tpu_custom_call.1} parent=1 // pred_fallthru
      _
    // Predicated region
    $region34: #{tpu_custom_call.1} parent=1 // pred_check
      _
    $region35: #{tpu_custom_call.1} parent=1 // pred_check_branch
      %111 = sbr.rel (0) target = $region37
    $region36: #{tpu_custom_call.1} parent=1 // pred_region
      %113 = vsyncadd [#allocation15], 0
      %s115 = sshll.u32 %s8, 4
      %s116 = int_to_ptr.hbm [resolvable:$true] %s115
      %s117 = sshll.u32 [#allocation14], 4
      %s118 = int_to_ptr.vmem [resolvable:$true] %s117
      %120 = dma.hbm_to_vmem [thread:$0]  %s116, 16, %s118, [#allocation15]
    $region37: #{tpu_custom_call.1} parent=1 // pred_fallthru
      _
    // Predicated region
    $region38: #{tpu_custom_call.1} parent=1 // pred_check
      _
    $region39: #{tpu_custom_call.1} parent=1 // pred_check_branch
      %122 = sbr.rel (0) target = $region41
    $region40: #{tpu_custom_call.1} parent=1 // pred_region
      %124 = vsyncadd [#allocation15], 0
      %s125 = sshll.u32 %s9, 4
      %s126 = int_to_ptr.hbm [resolvable:$true] %s125
      %s127 = sshll.u32 [#allocation16], 4
      %s128 = int_to_ptr.vmem [resolvable:$true] %s127
      %133 = dma.hbm_to_vmem [thread:$0]  %s126, 8192, %s128, [#allocation15], 512, 512, 32
    $region41: #{tpu_custom_call.1} parent=1 // pred_fallthru
      _
    // Predicated region
    $region42: #{tpu_custom_call.1} parent=1 // pred_check
      _
    $region43: #{tpu_custom_call.1} parent=1 // pred_check_branch
      %135 = sbr.rel (0) target = $region45
    $region44: #{tpu_custom_call.1} parent=1 // pred_region
      _
    $region45: #{tpu_custom_call.1} parent=1 // pred_fallthru
      _
    // Predicated region
    $region46: #{tpu_custom_call.1} parent=1 // pred_check
      _
    $region47: #{tpu_custom_call.1} parent=1 // pred_check_branch
      %137 = sbr.rel (0) target = $region49
    $region48: #{tpu_custom_call.1} parent=1 // pred_region
      %139 = vsyncadd [#allocation18], 0
      %s140 = sshll.u32 %s11, 4
      %s141 = int_to_ptr.hbm [resolvable:$true] %s140
      %s142 = sshll.u32 [#allocation17], 4
      %s143 = int_to_ptr.vmem [resolvable:$true] %s142
      %148 = dma.hbm_to_vmem [thread:$0]  %s141, 8192, %s143, [#allocation18], 128, 128, 8
    $region49: #{tpu_custom_call.1} parent=1 // pred_fallthru
      _
    // Predicated region
    $region50: #{tpu_custom_call.1} parent=1 // pred_check
      _
    $region51: #{tpu_custom_call.1} parent=1 // pred_check_branch
      %150 = sbr.rel (0) target = $region53
    $region52: #{tpu_custom_call.1} parent=1 // pred_region
      _
    $region53: #{tpu_custom_call.1} parent=1 // pred_fallthru
      _
    // Predicated region
    $region54: #{tpu_custom_call.1} parent=1 // pred_check
      _
    $region55: #{tpu_custom_call.1} parent=1 // pred_check_branch
      %152 = sbr.rel (0) target = $region57
    $region56: #{tpu_custom_call.1} parent=1 // pred_region
      %154 = dma.done [#allocation3], 512
    $region57: #{tpu_custom_call.1} parent=1 // pred_fallthru
      _
    // Predicated region
    $region58: #{tpu_custom_call.1} parent=1 // pred_check
      _
    $region59: #{tpu_custom_call.1} parent=1 // pred_check_branch
      %156 = sbr.rel (0) target = $region61
    $region60: #{tpu_custom_call.1} parent=1 // pred_region
      %158 = dma.done [#allocation6], 16
    $region61: #{tpu_custom_call.1} parent=1 // pred_fallthru
      _
    // Predicated region
    $region62: #{tpu_custom_call.1} parent=1 // pred_check
      _
    $region63: #{tpu_custom_call.1} parent=1 // pred_check_branch
      %160 = sbr.rel (0) target = $region65
    $region64: #{tpu_custom_call.1} parent=1 // pred_region
      %162 = dma.done [#allocation6], 16
    $region65: #{tpu_custom_call.1} parent=1 // pred_fallthru
      _
    // Predicated region
    $region66: #{tpu_custom_call.1} parent=1 // pred_check
      _
    $region67: #{tpu_custom_call.1} parent=1 // pred_check_branch
      %164 = sbr.rel (0) target = $region69
    $region68: #{tpu_custom_call.1} parent=1 // pred_region
      %166 = dma.done [#allocation9], 6144
    $region69: #{tpu_custom_call.1} parent=1 // pred_fallthru
      _
    // Predicated region
    $region70: #{tpu_custom_call.1} parent=1 // pred_check
      _
    $region71: #{tpu_custom_call.1} parent=1 // pred_check_branch
      %168 = sbr.rel (0) target = $region73
    $region72: #{tpu_custom_call.1} parent=1 // pred_region
      %170 = dma.done [#allocation9], 2048
    $region73: #{tpu_custom_call.1} parent=1 // pred_fallthru
      _
    // Predicated region
    $region74: #{tpu_custom_call.1} parent=1 // pred_check
      _
    $region75: #{tpu_custom_call.1} parent=1 // pred_check_branch
      %172 = sbr.rel (0) target = $region77
    $region76: #{tpu_custom_call.1} parent=1 // pred_region
      %174 = dma.done [#allocation12], 16
    $region77: #{tpu_custom_call.1} parent=1 // pred_fallthru
      _
    // Predicated region
    $region78: #{tpu_custom_call.1} parent=1 // pred_check
      _
    $region79: #{tpu_custom_call.1} parent=1 // pred_check_branch
      %176 = sbr.rel (0) target = $region81
    $region80: #{tpu_custom_call.1} parent=1 // pred_region
      %178 = dma.done [#allocation12], 16
    $region81: #{tpu_custom_call.1} parent=1 // pred_fallthru
      _
    // Predicated region
    $region82: #{tpu_custom_call.1} parent=1 // pred_check
      _
    $region83: #{tpu_custom_call.1} parent=1 // pred_check_branch
      %180 = sbr.rel (0) target = $region85
    $region84: #{tpu_custom_call.1} parent=1 // pred_region
      %182 = dma.done [#allocation15], 16
    $region85: #{tpu_custom_call.1} parent=1 // pred_fallthru
      _
    // Predicated region
    $region86: #{tpu_custom_call.1} parent=1 // pred_check
      _
    $region87: #{tpu_custom_call.1} parent=1 // pred_check_branch
      %184 = sbr.rel (0) target = $region89
    $region88: #{tpu_custom_call.1} parent=1 // pred_region
      %186 = dma.done [#allocation15], 8192
    $region89: #{tpu_custom_call.1} parent=1 // pred_fallthru
      _
    // Predicated region
    $region90: #{tpu_custom_call.1} parent=1 // pred_check
      _
    $region91: #{tpu_custom_call.1} parent=1 // pred_check_branch
      %188 = sbr.rel (0) target = $region93
    $region92: #{tpu_custom_call.1} parent=1 // pred_region
      %190 = dma.done [#allocation18], 8192
    $region93: #{tpu_custom_call.1} parent=1 // pred_fallthru
      _
    %v191 = vld [vmem:[#allocation2] sm:$0xff]
    %v192 = vld [vmem:[#allocation2 + $0x8] sm:$0xff]
    %v193 = vld [vmem:[#allocation2 + $0x10] sm:$0xff]
    %v194 = vld [vmem:[#allocation2 + $0x18] sm:$0xff]
    %v195 = vld [vmem:[#allocation5] sm:$0x1]
    %v196 = vld [vmem:[#allocation7] sm:$0x1]
    %197 = vadd.xlane.f32.xlu0 %v191
    %v198 = vpop.xlane.xlu0 %197
    %199 = vadd.xlane.f32.xlu0 %v192
    %v200 = vpop.xlane.xlu0 %199
    %201 = vadd.xlane.f32.xlu0 %v193
    %v202 = vpop.xlane.xlu0 %201
    %203 = vadd.xlane.f32.xlu0 %v194
    %v204 = vpop.xlane.xlu0 %203
    %v205 = vrcp.pop 128.0
    %v206 = vmul.f32 128.0, %v205
    %v207 = vsub.f32 1.0, %v206
    %v208 = vmul.f32 %v205, %v207
    %v209 = vadd.f32 %v205, %v208
    %vm210 = vweird.f32 %v205
    %v211 = vsel %vm210, %v205, %v209
    %v212 = vmul.f32 %v198, %v211
    %v213 = vmul.f32 %v200, %v211
    %v214 = vmul.f32 %v202, %v211
    %v215 = vmul.f32 %v204, %v211
    %v216 = vsub.f32 %v191, %v212
    %v217 = vsub.f32 %v192, %v213
    %v218 = vsub.f32 %v193, %v214
    %v219 = vsub.f32 %v194, %v215
    %v220 = vmul.f32 %v216, %v216
    %v221 = vmul.f32 %v217, %v217
    %v222 = vmul.f32 %v218, %v218
    %v223 = vmul.f32 %v219, %v219
    %224 = vadd.xlane.f32.xlu0 %v220
    %v225 = vpop.xlane.xlu0 %224
    %226 = vadd.xlane.f32.xlu0 %v221
    %v227 = vpop.xlane.xlu0 %226
    %228 = vadd.xlane.f32.xlu0 %v222
    %v229 = vpop.xlane.xlu0 %228
    %230 = vadd.xlane.f32.xlu0 %v223
    %v231 = vpop.xlane.xlu0 %230
    %v232 = vmul.f32 %v225, %v211
    %v233 = vmul.f32 %v227, %v211
    %v234 = vmul.f32 %v229, %v211
    %v235 = vmul.f32 %v231, %v211
    %v236 = vadd.f32 %v232, 1e-05
    %v237 = vadd.f32 %v233, 1e-05
    %v238 = vadd.f32 %v234, 1e-05
    %v239 = vadd.f32 %v235, 1e-05
    %v240 = vrsqrt.pop %v236
    %v241 = vmul.f32 %v240, %v236
    %v242 = vmul.f32 %v241, %v240
    %v243 = vmul.f32 0.5, %v242
    %v244 = vsub.f32 1.5, %v243
    %v245 = vmul.f32 %v240, %v244
    %vm246 = vweird.f32 %v236
    %vm247 = vweird.f32 %v240
    %vm248 = vmor %vm246, %vm247
    %v249 = vsel %vm248, %v240, %v245
    %v250 = vrsqrt.pop %v237
    %v251 = vmul.f32 %v250, %v237
    %v252 = vmul.f32 %v251, %v250
    %v253 = vmul.f32 0.5, %v252
    %v254 = vsub.f32 1.5, %v253
    %v255 = vmul.f32 %v250, %v254
    %vm256 = vweird.f32 %v237
    %vm257 = vweird.f32 %v250
    %vm258 = vmor %vm256, %vm257
    %v259 = vsel %vm258, %v250, %v255
    %v260 = vrsqrt.pop %v238
    %v261 = vmul.f32 %v260, %v238
    %v262 = vmul.f32 %v261, %v260
    %v263 = vmul.f32 0.5, %v262
    %v264 = vsub.f32 1.5, %v263
    %v265 = vmul.f32 %v260, %v264
    %vm266 = vweird.f32 %v238
    %vm267 = vweird.f32 %v260
    %vm268 = vmor %vm266, %vm267
    %v269 = vsel %vm268, %v260, %v265
    %v270 = vrsqrt.pop %v239
    %v271 = vmul.f32 %v270, %v239
    %v272 = vmul.f32 %v271, %v270
    %v273 = vmul.f32 0.5, %v272
    %v274 = vsub.f32 1.5, %v273
    %v275 = vmul.f32 %v270, %v274
    %vm276 = vweird.f32 %v239
    %vm277 = vweird.f32 %v270
    %vm278 = vmor %vm276, %vm277
    %v279 = vsel %vm278, %v270, %v275
    %v280 = vmul.f32 %v216, %v249
    %v281 = vmul.f32 %v217, %v259
    %v282 = vmul.f32 %v218, %v269
    %v283 = vmul.f32 %v219, %v279
    %v285 = vperm.slane %v195, 0
    %v287 = vmul.f32 %v280, %v285
    %v288 = vmul.f32 %v281, %v285
    %v289 = vmul.f32 %v282, %v285
    %v290 = vmul.f32 %v283, %v285
    %v292 = vperm.slane %v196, 0
    %v294 = vadd.f32 %v287, %v292
    %v295 = vadd.f32 %v288, %v292
    %v296 = vadd.f32 %v289, %v292
    %v297 = vadd.f32 %v290, %v292
    %v298 = vld [vmem:[#allocation8] sm:$0xff]
    %v299 = vld [vmem:[#allocation8 + $0x8] sm:$0xff]
    %v300 = vld [vmem:[#allocation8 + $0x10] sm:$0xff]
    %v301 = vld [vmem:[#allocation8 + $0x18] sm:$0xff]
    %v302 = vld [vmem:[#allocation8 + $0x20] sm:$0xff]
    %v303 = vld [vmem:[#allocation8 + $0x28] sm:$0xff]
    %v304 = vld [vmem:[#allocation8 + $0x30] sm:$0xff]
    %v305 = vld [vmem:[#allocation8 + $0x38] sm:$0xff]
    %v306 = vld [vmem:[#allocation8 + $0x40] sm:$0xff]
    %v307 = vld [vmem:[#allocation8 + $0x48] sm:$0xff]
    %v308 = vld [vmem:[#allocation8 + $0x50] sm:$0xff]
    %v309 = vld [vmem:[#allocation8 + $0x58] sm:$0xff]
    %v310 = vld [vmem:[#allocation8 + $0x60] sm:$0xff]
    %v311 = vld [vmem:[#allocation8 + $0x68] sm:$0xff]
    %v312 = vld [vmem:[#allocation8 + $0x70] sm:$0xff]
    %v313 = vld [vmem:[#allocation8 + $0x78] sm:$0xff]
    %v314 = vld [vmem:[#allocation8 + $0x80] sm:$0xff]
    %v315 = vld [vmem:[#allocation8 + $0x88] sm:$0xff]
    %v316 = vld [vmem:[#allocation8 + $0x90] sm:$0xff]
    %v317 = vld [vmem:[#allocation8 + $0x98] sm:$0xff]
    %v318 = vld [vmem:[#allocation8 + $0xa0] sm:$0xff]
    %v319 = vld [vmem:[#allocation8 + $0xa8] sm:$0xff]
    %v320 = vld [vmem:[#allocation8 + $0xb0] sm:$0xff]
    %v321 = vld [vmem:[#allocation8 + $0xb8] sm:$0xff]
    %v322 = vld [vmem:[#allocation8 + $0xc0] sm:$0xff]
    %v323 = vld [vmem:[#allocation8 + $0xc8] sm:$0xff]
    %v324 = vld [vmem:[#allocation8 + $0xd0] sm:$0xff]
    %v325 = vld [vmem:[#allocation8 + $0xd8] sm:$0xff]
    %v326 = vld [vmem:[#allocation8 + $0xe0] sm:$0xff]
    %v327 = vld [vmem:[#allocation8 + $0xe8] sm:$0xff]
    %v328 = vld [vmem:[#allocation8 + $0xf0] sm:$0xff]
    %v329 = vld [vmem:[#allocation8 + $0xf8] sm:$0xff]
    %v330 = vld [vmem:[#allocation8 + $0x100] sm:$0xff]
    %v331 = vld [vmem:[#allocation8 + $0x108] sm:$0xff]
    %v332 = vld [vmem:[#allocation8 + $0x110] sm:$0xff]
    %v333 = vld [vmem:[#allocation8 + $0x118] sm:$0xff]
    %v334 = vld [vmem:[#allocation8 + $0x120] sm:$0xff]
    %v335 = vld [vmem:[#allocation8 + $0x128] sm:$0xff]
    %v336 = vld [vmem:[#allocation8 + $0x130] sm:$0xff]
    %v337 = vld [vmem:[#allocation8 + $0x138] sm:$0xff]
    %v338 = vld [vmem:[#allocation8 + $0x140] sm:$0xff]
    %v339 = vld [vmem:[#allocation8 + $0x148] sm:$0xff]
    %v340 = vld [vmem:[#allocation8 + $0x150] sm:$0xff]
    %v341 = vld [vmem:[#allocation8 + $0x158] sm:$0xff]
    %v342 = vld [vmem:[#allocation8 + $0x160] sm:$0xff]
    %v343 = vld [vmem:[#allocation8 + $0x168] sm:$0xff]
    %v344 = vld [vmem:[#allocation8 + $0x170] sm:$0xff]
    %v345 = vld [vmem:[#allocation8 + $0x178] sm:$0xff]
    %v346 = vld [vmem:[%s4] sm:$0x7]
    %v348 = vperm.slane %v346, 0
    %v349 = vperm.slane %v346, 1
    %v350 = vperm.slane %v346, 2
    %354 = vmatpush.msra.mxu0 %v343
    %355 = vmatpush.msra.mxu0 %v340
    %356 = vmatpush.msra.mxu0 %v337
    %357 = vmatpush.msra.mxu0 %v334
    %358 = vmatpush.msra.mxu0 %v331
    %359 = vmatpush.msra.mxu0 %v328
    %360 = vmatpush.msra.mxu0 %v325
    %361 = vmatpush.msra.mxu0 %v322
    %362 = vmatpush.msra.mxu0 %v319
    %363 = vmatpush.msra.mxu0 %v316
    %364 = vmatpush.msra.mxu0 %v313
    %365 = vmatpush.msra.mxu0 %v310
    %366 = vmatpush.msra.mxu0 %v307
    %367 = vmatpush.msra.mxu0 %v304
    %368 = vmatpush.msra.mxu0 %v301
    %369 = vmatpush.msra.mxu0 %v298
    %370 = vmatmul.f32.gmra.mxu0 %v294
    %v371 = vpop.f32.mrf.mxu0
    %v372 = vadd.f32 %v348, %v371
    %373 = vmatmul.f32.gmra.mxu0 %v295
    %v374 = vpop.f32.mrf.mxu0
    %v375 = vadd.f32 %v348, %v374
    %376 = vmatmul.f32.gmra.mxu0 %v296
    %v377 = vpop.f32.mrf.mxu0
    %v378 = vadd.f32 %v348, %v377
    %379 = vmatmul.f32.gmra.mxu0 %v297
    %v380 = vpop.f32.mrf.mxu0
    %v381 = vadd.f32 %v348, %v380
    %382 = vdwg.mxu0
    %383 = vmatpush.msra.mxu0 %v344
    %384 = vmatpush.msra.mxu0 %v341
    %385 = vmatpush.msra.mxu0 %v338
    %386 = vmatpush.msra.mxu0 %v335
    %387 = vmatpush.msra.mxu0 %v332
    %388 = vmatpush.msra.mxu0 %v329
    %389 = vmatpush.msra.mxu0 %v326
    %390 = vmatpush.msra.mxu0 %v323
    %391 = vmatpush.msra.mxu0 %v320
    %392 = vmatpush.msra.mxu0 %v317
    %393 = vmatpush.msra.mxu0 %v314
    %394 = vmatpush.msra.mxu0 %v311
    %395 = vmatpush.msra.mxu0 %v308
    %396 = vmatpush.msra.mxu0 %v305
    %397 = vmatpush.msra.mxu0 %v302
    %398 = vmatpush.msra.mxu0 %v299
    %399 = vmatmul.f32.gmra.mxu0 %v294
    %v400 = vpop.f32.mrf.mxu0
    %v401 = vadd.f32 %v349, %v400
    %402 = vmatmul.f32.gmra.mxu0 %v295
    %v403 = vpop.f32.mrf.mxu0
    %v404 = vadd.f32 %v349, %v403
    %405 = vmatmul.f32.gmra.mxu0 %v296
    %v406 = vpop.f32.mrf.mxu0
    %v407 = vadd.f32 %v349, %v406
    %408 = vmatmul.f32.gmra.mxu0 %v297
    %v409 = vpop.f32.mrf.mxu0
    %v410 = vadd.f32 %v349, %v409
    %411 = vdwg.mxu0
    %412 = vmatpush.msra.mxu0 %v345
    %413 = vmatpush.msra.mxu0 %v342
    %414 = vmatpush.msra.mxu0 %v339
    %415 = vmatpush.msra.mxu0 %v336
    %416 = vmatpush.msra.mxu0 %v333
    %417 = vmatpush.msra.mxu0 %v330
    %418 = vmatpush.msra.mxu0 %v327
    %419 = vmatpush.msra.mxu0 %v324
    %420 = vmatpush.msra.mxu0 %v321
    %421 = vmatpush.msra.mxu0 %v318
    %422 = vmatpush.msra.mxu0 %v315
    %423 = vmatpush.msra.mxu0 %v312
    %424 = vmatpush.msra.mxu0 %v309
    %425 = vmatpush.msra.mxu0 %v306
    %426 = vmatpush.msra.mxu0 %v303
    %427 = vmatpush.msra.mxu0 %v300
    %428 = vmatmul.f32.gmra.mxu0 %v294
    %v429 = vpop.f32.mrf.mxu0
    %v430 = vadd.f32 %v350, %v429
    %431 = vmatmul.f32.gmra.mxu0 %v295
    %v432 = vpop.f32.mrf.mxu0
    %v433 = vadd.f32 %v350, %v432
    %434 = vmatmul.f32.gmra.mxu0 %v296
    %v435 = vpop.f32.mrf.mxu0
    %v436 = vadd.f32 %v350, %v435
    %437 = vmatmul.f32.gmra.mxu0 %v297
    %v438 = vpop.f32.mrf.mxu0
    %v439 = vadd.f32 %v350, %v438
    %440 = vdwg.mxu0
    %v441 = vmul.f32 %v372, 0.17677669
    %v442 = vmul.f32 %v375, 0.17677669
    %v443 = vmul.f32 %v378, 0.17677669
    %v444 = vmul.f32 %v381, 0.17677669
    %v445 = vlaneseq
    %v446 = vshrl.u32 %v445, 7
    %v447 = vadd.s32 %v446, 8
    %v448 = vlaneseq
    %v449 = vand.u32 %v448, 127
    %vm450 = vcmp.lt.s32.totalorder %v446, 15
    %vm451 = vcmp.lt.s32.totalorder %v447, 15
    %vm452 = vcmp.eq.s32.totalorder %v449, 15
    %vm453 = vmor %vm450, %vm452
    %vm454 = vmor %vm451, %vm452
    %v455 = vsel %vm453, 0.0, -1e+30
    %v456 = vsel %vm454, 0.0, -1e+30
    %v457 = vld [vmem:[#allocation10] sm:$0xff]
    %v458 = vld [vmem:[#allocation10 + $0x8] sm:$0xff]
    %v459 = vld [vmem:[#allocation10 + $0x10] sm:$0xff]
    %v460 = vld [vmem:[#allocation10 + $0x18] sm:$0xff]
    %v461 = vld [vmem:[#allocation10 + $0x20] sm:$0xff]
    %v462 = vld [vmem:[#allocation10 + $0x28] sm:$0xff]
    %v463 = vld [vmem:[#allocation10 + $0x30] sm:$0xff]
    %v464 = vld [vmem:[#allocation10 + $0x38] sm:$0xff]
    %v465 = vld [vmem:[#allocation10 + $0x40] sm:$0xff]
    %v466 = vld [vmem:[#allocation10 + $0x48] sm:$0xff]
    %v467 = vld [vmem:[#allocation10 + $0x50] sm:$0xff]
    %v468 = vld [vmem:[#allocation10 + $0x58] sm:$0xff]
    %v469 = vld [vmem:[#allocation10 + $0x60] sm:$0xff]
    %v470 = vld [vmem:[#allocation10 + $0x68] sm:$0xff]
    %v471 = vld [vmem:[#allocation10 + $0x70] sm:$0xff]
    %v472 = vld [vmem:[#allocation10 + $0x78] sm:$0xff]
    %vm473 = vcmask 261120
    %v475 = vsel %vm473, %v441, 0
    %v478 = vsel %vm473, %v442, 0
    %v481 = vsel %vm473, %v401, 0
    %v484 = vsel %vm473, %v404, 0
    %486 = vmatpush.xpose.msra.mxu0 0.0
    %487 = vmatpush.xpose.msra.mxu0 0.0
    %488 = vmatpush.xpose.msra.mxu0 0.0
    %489 = vmatpush.xpose.msra.mxu0 0.0
    %490 = vmatpush.xpose.msra.mxu0 0.0
    %491 = vmatpush.xpose.msra.mxu0 0.0
    %492 = vmatpush.xpose.msra.mxu0 0.0
    %493 = vmatpush.xpose.msra.mxu0 0.0
    %494 = vmatpush.xpose.msra.mxu0 0.0
    %495 = vmatpush.xpose.msra.mxu0 0.0
    %496 = vmatpush.xpose.msra.mxu0 0.0
    %497 = vmatpush.xpose.msra.mxu0 0.0
    %498 = vmatpush.xpose.msra.mxu0 0.0
    %499 = vmatpush.xpose.msra.mxu0 0.0
    %500 = vmatpush.xpose.msra.mxu0 %v484
    %501 = vmatpush.xpose.msra.mxu0 %v481
    %502 = vmatmul.f32.gmra.mxu0 %v475
    %v503 = vpop.f32.mrf.mxu0
    %v504 = vadd.f32 %v455, %v503
    %505 = vmatmul.f32.gmra.mxu0 %v478
    %v506 = vpop.f32.mrf.mxu0
    %v507 = vadd.f32 %v456, %v506
    %508 = vdwg.mxu0
    %vm509 = vcmask 130048
    %v510 = vsel %vm509, %v504, -inf
    %511 = vmax.xlane.f32.xlu0 %v510
    %v512 = vpop.xlane.xlu0 %511
    %v513 = vsel %vm509, %v507, -inf
    %514 = vmax.xlane.f32.xlu0 %v513
    %v515 = vpop.xlane.xlu0 %514
    %v516 = vsub.f32 %v504, %v512
    %v517 = vsub.f32 %v507, %v515
    %v518 = vmul.f32 %v516, 1.442695
    %v519 = vpow.pop %v518
    %v520 = vmul.f32 %v517, 1.442695
    %v521 = vpow.pop %v520
    %v522 = vsel %vm509, %v519, 0.0
    %523 = vadd.xlane.f32.xlu0 %v522
    %v524 = vpop.xlane.xlu0 %523
    %v525 = vsel %vm509, %v521, 0.0
    %526 = vadd.xlane.f32.xlu0 %v525
    %v527 = vpop.xlane.xlu0 %526
    %v529 = vsel %vm509, %v519, 0
    %v532 = vsel %vm509, %v521, 0
    %534 = vmatpush.msra.mxu0 0.0
    %535 = vmatpush.msra.mxu0 0.0
    %536 = vmatpush.msra.mxu0 0.0
    %537 = vmatpush.msra.mxu0 0.0
    %538 = vmatpush.msra.mxu0 0.0
    %539 = vmatpush.msra.mxu0 0.0
    %540 = vmatpush.msra.mxu0 0.0
    %541 = vmatpush.msra.mxu0 0.0
    %542 = vmatpush.msra.mxu0 0.0
    %543 = vmatpush.msra.mxu0 0.0
    %544 = vmatpush.msra.mxu0 0.0
    %545 = vmatpush.msra.mxu0 0.0
    %546 = vmatpush.msra.mxu0 0.0
    %547 = vmatpush.msra.mxu0 0.0
    %548 = vmatpush.msra.mxu0 %v433
    %549 = vmatpush.msra.mxu0 %v430
    %550 = vmatmul.f32.gmra.mxu0 %v529
    %v551 = vpop.f32.mrf.mxu0
    %v552 = vadd.f32 0.0, %v551
    %553 = vmatmul.f32.gmra.mxu0 %v532
    %v554 = vpop.f32.mrf.mxu0
    %v555 = vadd.f32 0.0, %v554
    %556 = vdwg.mxu0
    %v557 = vrcp.pop %v524
    %v558 = vrcp.pop %v527
    %v559 = vmul.f32 %v552, %v557
    %v560 = vmul.f32 %v555, %v558
    %561 = vrot.lane.b32.xlu0 %v441, 96
    %v562 = vpop.permute.xlu0 %561
    %563 = vrot.lane.b32.xlu0 %v442, 96
    %v564 = vpop.permute.xlu0 %563
    %565 = vrot.lane.b32.xlu0 %v401, 96
    %v566 = vpop.permute.xlu0 %565
    %567 = vrot.lane.b32.xlu0 %v404, 96
    %v568 = vpop.permute.xlu0 %567
    %v569 = vsel %vm473, %v562, 0
    %v571 = vsel %vm473, %v564, 0
    %v573 = vsel %vm473, %v566, 0
    %v575 = vsel %vm473, %v568, 0
    %577 = vmatpush.xpose.msra.mxu0 0.0
    %578 = vmatpush.xpose.msra.mxu0 0.0
    %579 = vmatpush.xpose.msra.mxu0 0.0
    %580 = vmatpush.xpose.msra.mxu0 0.0
    %581 = vmatpush.xpose.msra.mxu0 0.0
    %582 = vmatpush.xpose.msra.mxu0 0.0
    %583 = vmatpush.xpose.msra.mxu0 0.0
    %584 = vmatpush.xpose.msra.mxu0 0.0
    %585 = vmatpush.xpose.msra.mxu0 0.0
    %586 = vmatpush.xpose.msra.mxu0 0.0
    %587 = vmatpush.xpose.msra.mxu0 0.0
    %588 = vmatpush.xpose.msra.mxu0 0.0
    %589 = vmatpush.xpose.msra.mxu0 0.0
    %590 = vmatpush.xpose.msra.mxu0 0.0
    %591 = vmatpush.xpose.msra.mxu0 %v575
    %592 = vmatpush.xpose.msra.mxu0 %v573
    %593 = vmatmul.f32.gmra.mxu0 %v569
    %v594 = vpop.f32.mrf.mxu0
    %v595 = vadd.f32 %v455, %v594
    %596 = vmatmul.f32.gmra.mxu0 %v571
    %v597 = vpop.f32.mrf.mxu0
    %v598 = vadd.f32 %v456, %v597
    %599 = vdwg.mxu0
    %v600 = vsel %vm509, %v595, -inf
    %601 = vmax.xlane.f32.xlu0 %v600
    %v602 = vpop.xlane.xlu0 %601
    %v603 = vsel %vm509, %v598, -inf
    %604 = vmax.xlane.f32.xlu0 %v603
    %v605 = vpop.xlane.xlu0 %604
    %v606 = vsub.f32 %v595, %v602
    %v607 = vsub.f32 %v598, %v605
    %v608 = vmul.f32 %v606, 1.442695
    %v609 = vpow.pop %v608
    %v610 = vmul.f32 %v607, 1.442695
    %v611 = vpow.pop %v610
    %v612 = vsel %vm509, %v609, 0.0
    %613 = vadd.xlane.f32.xlu0 %v612
    %v614 = vpop.xlane.xlu0 %613
    %v615 = vsel %vm509, %v611, 0.0
    %616 = vadd.xlane.f32.xlu0 %v615
    %v617 = vpop.xlane.xlu0 %616
    %620 = vrot.lane.b32.xlu0 %v430, 96
    %v621 = vpop.permute.xlu0 %620
    %622 = vrot.lane.b32.xlu0 %v433, 96
    %v623 = vpop.permute.xlu0 %622
    %v627 = vsel %vm509, %v609, 0
    %v630 = vsel %vm509, %v611, 0
    %632 = vmatpush.msra.mxu0 0.0
    %633 = vmatpush.msra.mxu0 0.0
    %634 = vmatpush.msra.mxu0 0.0
    %635 = vmatpush.msra.mxu0 0.0
    %636 = vmatpush.msra.mxu0 0.0
    %637 = vmatpush.msra.mxu0 0.0
    %638 = vmatpush.msra.mxu0 0.0
    %639 = vmatpush.msra.mxu0 0.0
    %640 = vmatpush.msra.mxu0 0.0
    %641 = vmatpush.msra.mxu0 0.0
    %642 = vmatpush.msra.mxu0 0.0
    %643 = vmatpush.msra.mxu0 0.0
    %644 = vmatpush.msra.mxu0 0.0
    %645 = vmatpush.msra.mxu0 0.0
    %646 = vmatpush.msra.mxu0 %v623
    %647 = vmatpush.msra.mxu0 %v621
    %648 = vmatmul.f32.gmra.mxu0 %v627
    %v649 = vpop.f32.mrf.mxu0
    %v650 = vadd.f32 0.0, %v649
    %651 = vmatmul.f32.gmra.mxu0 %v630
    %v652 = vpop.f32.mrf.mxu0
    %v653 = vadd.f32 0.0, %v652
    %654 = vdwg.mxu0
    %v655 = vrcp.pop %v614
    %v656 = vrcp.pop %v617
    %v657 = vmul.f32 %v650, %v655
    %v658 = vmul.f32 %v653, %v656
    %v660 = vsel %vm473, %v657, 0
    %v663 = vsel %vm473, %v658, 0
    %665 = vmatpush.msra.mxu0 0.0
    %666 = vmatpush.msra.mxu0 0.0
    %667 = vmatpush.msra.mxu0 0.0
    %668 = vmatpush.msra.mxu0 0.0
    %669 = vmatpush.msra.mxu0 0.0
    %670 = vmatpush.msra.mxu0 0.0
    %671 = vmatpush.msra.mxu0 0.0
    %672 = vmatpush.msra.mxu0 0.0
    %673 = vmatpush.msra.mxu0 0.0
    %674 = vmatpush.msra.mxu0 0.0
    %675 = vmatpush.msra.mxu0 0.0
    %676 = vmatpush.msra.mxu0 0.0
    %677 = vmatpush.msra.mxu0 %v464
    %678 = vmatpush.msra.mxu0 %v463
    %679 = vmatpush.msra.mxu0 %v462
    %680 = vmatpush.msra.mxu0 %v461
    %681 = vmatmul.f32.gmra.mxu0 %v660
    %v682 = vpop.f32.mrf.mxu0
    %v683 = vadd.f32 0.0, %v682
    %684 = vmatmul.f32.gmra.mxu0 %v663
    %v685 = vpop.f32.mrf.mxu0
    %v686 = vadd.f32 0.0, %v685
    %687 = vdwg.mxu0
    %v689 = vsel %vm473, %v559, 0
    %v692 = vsel %vm473, %v560, 0
    %694 = vmatpush.msra.mxu0 0.0
    %695 = vmatpush.msra.mxu0 0.0
    %696 = vmatpush.msra.mxu0 0.0
    %697 = vmatpush.msra.mxu0 0.0
    %698 = vmatpush.msra.mxu0 0.0
    %699 = vmatpush.msra.mxu0 0.0
    %700 = vmatpush.msra.mxu0 0.0
    %701 = vmatpush.msra.mxu0 0.0
    %702 = vmatpush.msra.mxu0 0.0
    %703 = vmatpush.msra.mxu0 0.0
    %704 = vmatpush.msra.mxu0 0.0
    %705 = vmatpush.msra.mxu0 0.0
    %706 = vmatpush.msra.mxu0 %v460
    %707 = vmatpush.msra.mxu0 %v459
    %708 = vmatpush.msra.mxu0 %v458
    %709 = vmatpush.msra.mxu0 %v457
    %710 = vmatmul.f32.gmra.mxu0 %v689
    %v711 = vpop.f32.mrf.mxu0
    %v712 = vadd.f32 %v683, %v711
    %713 = vmatmul.f32.gmra.mxu0 %v692
    %v714 = vpop.f32.mrf.mxu0
    %v715 = vadd.f32 %v686, %v714
    %716 = vdwg.mxu0
    %717 = vrot.lane.b32.xlu0 %v441, 64
    %v718 = vpop.permute.xlu0 %717
    %719 = vrot.lane.b32.xlu0 %v442, 64
    %v720 = vpop.permute.xlu0 %719
    %721 = vrot.lane.b32.xlu0 %v401, 64
    %v722 = vpop.permute.xlu0 %721
    %723 = vrot.lane.b32.xlu0 %v404, 64
    %v724 = vpop.permute.xlu0 %723
    %v725 = vsel %vm473, %v718, 0
    %v727 = vsel %vm473, %v720, 0
    %v729 = vsel %vm473, %v722, 0
    %v731 = vsel %vm473, %v724, 0
    %733 = vmatpush.xpose.msra.mxu0 0.0
    %734 = vmatpush.xpose.msra.mxu0 0.0
    %735 = vmatpush.xpose.msra.mxu0 0.0
    %736 = vmatpush.xpose.msra.mxu0 0.0
    %737 = vmatpush.xpose.msra.mxu0 0.0
    %738 = vmatpush.xpose.msra.mxu0 0.0
    %739 = vmatpush.xpose.msra.mxu0 0.0
    %740 = vmatpush.xpose.msra.mxu0 0.0
    %741 = vmatpush.xpose.msra.mxu0 0.0
    %742 = vmatpush.xpose.msra.mxu0 0.0
    %743 = vmatpush.xpose.msra.mxu0 0.0
    %744 = vmatpush.xpose.msra.mxu0 0.0
    %745 = vmatpush.xpose.msra.mxu0 0.0
    %746 = vmatpush.xpose.msra.mxu0 0.0
    %747 = vmatpush.xpose.msra.mxu0 %v731
    %748 = vmatpush.xpose.msra.mxu0 %v729
    %749 = vmatmul.f32.gmra.mxu0 %v725
    %v750 = vpop.f32.mrf.mxu0
    %v751 = vadd.f32 %v455, %v750
    %752 = vmatmul.f32.gmra.mxu0 %v727
    %v753 = vpop.f32.mrf.mxu0
    %v754 = vadd.f32 %v456, %v753
    %755 = vdwg.mxu0
    %v756 = vsel %vm509, %v751, -inf
    %757 = vmax.xlane.f32.xlu0 %v756
    %v758 = vpop.xlane.xlu0 %757
    %v759 = vsel %vm509, %v754, -inf
    %760 = vmax.xlane.f32.xlu0 %v759
    %v761 = vpop.xlane.xlu0 %760
    %v762 = vsub.f32 %v751, %v758
    %v763 = vsub.f32 %v754, %v761
    %v764 = vmul.f32 %v762, 1.442695
    %v765 = vpow.pop %v764
    %v766 = vmul.f32 %v763, 1.442695
    %v767 = vpow.pop %v766
    %v768 = vsel %vm509, %v765, 0.0
    %769 = vadd.xlane.f32.xlu0 %v768
    %v770 = vpop.xlane.xlu0 %769
    %v771 = vsel %vm509, %v767, 0.0
    %772 = vadd.xlane.f32.xlu0 %v771
    %v773 = vpop.xlane.xlu0 %772
    %774 = vrot.lane.b32.xlu0 %v430, 64
    %v775 = vpop.permute.xlu0 %774
    %776 = vrot.lane.b32.xlu0 %v433, 64
    %v777 = vpop.permute.xlu0 %776
    %v781 = vsel %vm509, %v765, 0
    %v784 = vsel %vm509, %v767, 0
    %786 = vmatpush.msra.mxu0 0.0
    %787 = vmatpush.msra.mxu0 0.0
    %788 = vmatpush.msra.mxu0 0.0
    %789 = vmatpush.msra.mxu0 0.0
    %790 = vmatpush.msra.mxu0 0.0
    %791 = vmatpush.msra.mxu0 0.0
    %792 = vmatpush.msra.mxu0 0.0
    %793 = vmatpush.msra.mxu0 0.0
    %794 = vmatpush.msra.mxu0 0.0
    %795 = vmatpush.msra.mxu0 0.0
    %796 = vmatpush.msra.mxu0 0.0
    %797 = vmatpush.msra.mxu0 0.0
    %798 = vmatpush.msra.mxu0 0.0
    %799 = vmatpush.msra.mxu0 0.0
    %800 = vmatpush.msra.mxu0 %v777
    %801 = vmatpush.msra.mxu0 %v775
    %802 = vmatmul.f32.gmra.mxu0 %v781
    %v803 = vpop.f32.mrf.mxu0
    %v804 = vadd.f32 0.0, %v803
    %805 = vmatmul.f32.gmra.mxu0 %v784
    %v806 = vpop.f32.mrf.mxu0
    %v807 = vadd.f32 0.0, %v806
    %808 = vdwg.mxu0
    %v809 = vrcp.pop %v770
    %v810 = vrcp.pop %v773
    %v811 = vmul.f32 %v804, %v809
    %v812 = vmul.f32 %v807, %v810
    %v814 = vsel %vm473, %v811, 0
    %v817 = vsel %vm473, %v812, 0
    %819 = vmatpush.msra.mxu0 0.0
    %820 = vmatpush.msra.mxu0 0.0
    %821 = vmatpush.msra.mxu0 0.0
    %822 = vmatpush.msra.mxu0 0.0
    %823 = vmatpush.msra.mxu0 0.0
    %824 = vmatpush.msra.mxu0 0.0
    %825 = vmatpush.msra.mxu0 0.0
    %826 = vmatpush.msra.mxu0 0.0
    %827 = vmatpush.msra.mxu0 0.0
    %828 = vmatpush.msra.mxu0 0.0
    %829 = vmatpush.msra.mxu0 0.0
    %830 = vmatpush.msra.mxu0 0.0
    %831 = vmatpush.msra.mxu0 %v468
    %832 = vmatpush.msra.mxu0 %v467
    %833 = vmatpush.msra.mxu0 %v466
    %834 = vmatpush.msra.mxu0 %v465
    %835 = vmatmul.f32.gmra.mxu0 %v814
    %v836 = vpop.f32.mrf.mxu0
    %v837 = vadd.f32 0.0, %v836
    %838 = vmatmul.f32.gmra.mxu0 %v817
    %v839 = vpop.f32.mrf.mxu0
    %v840 = vadd.f32 0.0, %v839
    %841 = vdwg.mxu0
    %v842 = vadd.f32 %v712, %v837
    %v843 = vadd.f32 %v715, %v840
    %844 = vrot.lane.b32.xlu0 %v441, 32
    %v845 = vpop.permute.xlu0 %844
    %846 = vrot.lane.b32.xlu0 %v442, 32
    %v847 = vpop.permute.xlu0 %846
    %848 = vrot.lane.b32.xlu0 %v401, 32
    %v849 = vpop.permute.xlu0 %848
    %850 = vrot.lane.b32.xlu0 %v404, 32
    %v851 = vpop.permute.xlu0 %850
    %v852 = vsel %vm473, %v845, 0
    %v854 = vsel %vm473, %v847, 0
    %v856 = vsel %vm473, %v849, 0
    %v858 = vsel %vm473, %v851, 0
    %860 = vmatpush.xpose.msra.mxu0 0.0
    %861 = vmatpush.xpose.msra.mxu0 0.0
    %862 = vmatpush.xpose.msra.mxu0 0.0
    %863 = vmatpush.xpose.msra.mxu0 0.0
    %864 = vmatpush.xpose.msra.mxu0 0.0
    %865 = vmatpush.xpose.msra.mxu0 0.0
    %866 = vmatpush.xpose.msra.mxu0 0.0
    %867 = vmatpush.xpose.msra.mxu0 0.0
    %868 = vmatpush.xpose.msra.mxu0 0.0
    %869 = vmatpush.xpose.msra.mxu0 0.0
    %870 = vmatpush.xpose.msra.mxu0 0.0
    %871 = vmatpush.xpose.msra.mxu0 0.0
    %872 = vmatpush.xpose.msra.mxu0 0.0
    %873 = vmatpush.xpose.msra.mxu0 0.0
    %874 = vmatpush.xpose.msra.mxu0 %v858
    %875 = vmatpush.xpose.msra.mxu0 %v856
    %876 = vmatmul.f32.gmra.mxu0 %v852
    %v877 = vpop.f32.mrf.mxu0
    %v878 = vadd.f32 %v455, %v877
    %879 = vmatmul.f32.gmra.mxu0 %v854
    %v880 = vpop.f32.mrf.mxu0
    %v881 = vadd.f32 %v456, %v880
    %882 = vdwg.mxu0
    %v883 = vsel %vm509, %v878, -inf
    %884 = vmax.xlane.f32.xlu0 %v883
    %v885 = vpop.xlane.xlu0 %884
    %v886 = vsel %vm509, %v881, -inf
    %887 = vmax.xlane.f32.xlu0 %v886
    %v888 = vpop.xlane.xlu0 %887
    %v889 = vsub.f32 %v878, %v885
    %v890 = vsub.f32 %v881, %v888
    %v891 = vmul.f32 %v889, 1.442695
    %v892 = vpow.pop %v891
    %v893 = vmul.f32 %v890, 1.442695
    %v894 = vpow.pop %v893
    %v895 = vsel %vm509, %v892, 0.0
    %896 = vadd.xlane.f32.xlu0 %v895
    %v897 = vpop.xlane.xlu0 %896
    %v898 = vsel %vm509, %v894, 0.0
    %899 = vadd.xlane.f32.xlu0 %v898
    %v900 = vpop.xlane.xlu0 %899
    %901 = vrot.lane.b32.xlu0 %v430, 32
    %v902 = vpop.permute.xlu0 %901
    %903 = vrot.lane.b32.xlu0 %v433, 32
    %v904 = vpop.permute.xlu0 %903
    %v908 = vsel %vm509, %v892, 0
    %v911 = vsel %vm509, %v894, 0
    %913 = vmatpush.msra.mxu0 0.0
    %914 = vmatpush.msra.mxu0 0.0
    %915 = vmatpush.msra.mxu0 0.0
    %916 = vmatpush.msra.mxu0 0.0
    %917 = vmatpush.msra.mxu0 0.0
    %918 = vmatpush.msra.mxu0 0.0
    %919 = vmatpush.msra.mxu0 0.0
    %920 = vmatpush.msra.mxu0 0.0
    %921 = vmatpush.msra.mxu0 0.0
    %922 = vmatpush.msra.mxu0 0.0
    %923 = vmatpush.msra.mxu0 0.0
    %924 = vmatpush.msra.mxu0 0.0
    %925 = vmatpush.msra.mxu0 0.0
    %926 = vmatpush.msra.mxu0 0.0
    %927 = vmatpush.msra.mxu0 %v904
    %928 = vmatpush.msra.mxu0 %v902
    %929 = vmatmul.f32.gmra.mxu0 %v908
    %v930 = vpop.f32.mrf.mxu0
    %v931 = vadd.f32 0.0, %v930
    %932 = vmatmul.f32.gmra.mxu0 %v911
    %v933 = vpop.f32.mrf.mxu0
    %v934 = vadd.f32 0.0, %v933
    %935 = vdwg.mxu0
    %v936 = vrcp.pop %v897
    %v937 = vrcp.pop %v900
    %v938 = vmul.f32 %v931, %v936
    %v939 = vmul.f32 %v934, %v937
    %v941 = vsel %vm473, %v938, 0
    %v944 = vsel %vm473, %v939, 0
    %946 = vmatpush.msra.mxu0 0.0
    %947 = vmatpush.msra.mxu0 0.0
    %948 = vmatpush.msra.mxu0 0.0
    %949 = vmatpush.msra.mxu0 0.0
    %950 = vmatpush.msra.mxu0 0.0
    %951 = vmatpush.msra.mxu0 0.0
    %952 = vmatpush.msra.mxu0 0.0
    %953 = vmatpush.msra.mxu0 0.0
    %954 = vmatpush.msra.mxu0 0.0
    %955 = vmatpush.msra.mxu0 0.0
    %956 = vmatpush.msra.mxu0 0.0
    %957 = vmatpush.msra.mxu0 0.0
    %958 = vmatpush.msra.mxu0 %v472
    %959 = vmatpush.msra.mxu0 %v471
    %960 = vmatpush.msra.mxu0 %v470
    %961 = vmatpush.msra.mxu0 %v469
    %962 = vmatmul.f32.gmra.mxu0 %v941
    %v963 = vpop.f32.mrf.mxu0
    %v964 = vadd.f32 0.0, %v963
    %965 = vmatmul.f32.gmra.mxu0 %v944
    %v966 = vpop.f32.mrf.mxu0
    %v967 = vadd.f32 0.0, %v966
    %968 = vdwg.mxu0
    %v969 = vadd.f32 %v842, %v964
    %v970 = vadd.f32 %v843, %v967
    %v972 = vsel %vm473, %v443, 0
    %v975 = vsel %vm473, %v444, 0
    %v978 = vsel %vm473, %v407, 0
    %v981 = vsel %vm473, %v410, 0
    %983 = vmatpush.xpose.msra.mxu0 0.0
    %984 = vmatpush.xpose.msra.mxu0 0.0
    %985 = vmatpush.xpose.msra.mxu0 0.0
    %986 = vmatpush.xpose.msra.mxu0 0.0
    %987 = vmatpush.xpose.msra.mxu0 0.0
    %988 = vmatpush.xpose.msra.mxu0 0.0
    %989 = vmatpush.xpose.msra.mxu0 0.0
    %990 = vmatpush.xpose.msra.mxu0 0.0
    %991 = vmatpush.xpose.msra.mxu0 0.0
    %992 = vmatpush.xpose.msra.mxu0 0.0
    %993 = vmatpush.xpose.msra.mxu0 0.0
    %994 = vmatpush.xpose.msra.mxu0 0.0
    %995 = vmatpush.xpose.msra.mxu0 0.0
    %996 = vmatpush.xpose.msra.mxu0 0.0
    %997 = vmatpush.xpose.msra.mxu0 %v981
    %998 = vmatpush.xpose.msra.mxu0 %v978
    %999 = vmatmul.f32.gmra.mxu0 %v972
    %v1000 = vpop.f32.mrf.mxu0
    %v1001 = vadd.f32 %v455, %v1000
    %1002 = vmatmul.f32.gmra.mxu0 %v975
    %v1003 = vpop.f32.mrf.mxu0
    %v1004 = vadd.f32 %v456, %v1003
    %1005 = vdwg.mxu0
    %v1006 = vsel %vm509, %v1001, -inf
    %1007 = vmax.xlane.f32.xlu0 %v1006
    %v1008 = vpop.xlane.xlu0 %1007
    %v1009 = vsel %vm509, %v1004, -inf
    %1010 = vmax.xlane.f32.xlu0 %v1009
    %v1011 = vpop.xlane.xlu0 %1010
    %v1012 = vsub.f32 %v1001, %v1008
    %v1013 = vsub.f32 %v1004, %v1011
    %v1014 = vmul.f32 %v1012, 1.442695
    %v1015 = vpow.pop %v1014
    %v1016 = vmul.f32 %v1013, 1.442695
    %v1017 = vpow.pop %v1016
    %v1018 = vsel %vm509, %v1015, 0.0
    %1019 = vadd.xlane.f32.xlu0 %v1018
    %v1020 = vpop.xlane.xlu0 %1019
    %v1021 = vsel %vm509, %v1017, 0.0
    %1022 = vadd.xlane.f32.xlu0 %v1021
    %v1023 = vpop.xlane.xlu0 %1022
    %v1025 = vsel %vm509, %v1015, 0
    %v1028 = vsel %vm509, %v1017, 0
    %1030 = vmatpush.msra.mxu0 0.0
    %1031 = vmatpush.msra.mxu0 0.0
    %1032 = vmatpush.msra.mxu0 0.0
    %1033 = vmatpush.msra.mxu0 0.0
    %1034 = vmatpush.msra.mxu0 0.0
    %1035 = vmatpush.msra.mxu0 0.0
    %1036 = vmatpush.msra.mxu0 0.0
    %1037 = vmatpush.msra.mxu0 0.0
    %1038 = vmatpush.msra.mxu0 0.0
    %1039 = vmatpush.msra.mxu0 0.0
    %1040 = vmatpush.msra.mxu0 0.0
    %1041 = vmatpush.msra.mxu0 0.0
    %1042 = vmatpush.msra.mxu0 0.0
    %1043 = vmatpush.msra.mxu0 0.0
    %1044 = vmatpush.msra.mxu0 %v439
    %1045 = vmatpush.msra.mxu0 %v436
    %1046 = vmatmul.f32.gmra.mxu0 %v1025
    %v1047 = vpop.f32.mrf.mxu0
    %v1048 = vadd.f32 0.0, %v1047
    %1049 = vmatmul.f32.gmra.mxu0 %v1028
    %v1050 = vpop.f32.mrf.mxu0
    %v1051 = vadd.f32 0.0, %v1050
    %1052 = vdwg.mxu0
    %v1053 = vrcp.pop %v1020
    %v1054 = vrcp.pop %v1023
    %v1055 = vmul.f32 %v1048, %v1053
    %v1056 = vmul.f32 %v1051, %v1054
    %1057 = vrot.lane.b32.xlu0 %v443, 96
    %v1058 = vpop.permute.xlu0 %1057
    %1059 = vrot.lane.b32.xlu0 %v444, 96
    %v1060 = vpop.permute.xlu0 %1059
    %1061 = vrot.lane.b32.xlu0 %v407, 96
    %v1062 = vpop.permute.xlu0 %1061
    %1063 = vrot.lane.b32.xlu0 %v410, 96
    %v1064 = vpop.permute.xlu0 %1063
    %v1065 = vsel %vm473, %v1058, 0
    %v1067 = vsel %vm473, %v1060, 0
    %v1069 = vsel %vm473, %v1062, 0
    %v1071 = vsel %vm473, %v1064, 0
    %1073 = vmatpush.xpose.msra.mxu0 0.0
    %1074 = vmatpush.xpose.msra.mxu0 0.0
    %1075 = vmatpush.xpose.msra.mxu0 0.0
    %1076 = vmatpush.xpose.msra.mxu0 0.0
    %1077 = vmatpush.xpose.msra.mxu0 0.0
    %1078 = vmatpush.xpose.msra.mxu0 0.0
    %1079 = vmatpush.xpose.msra.mxu0 0.0
    %1080 = vmatpush.xpose.msra.mxu0 0.0
    %1081 = vmatpush.xpose.msra.mxu0 0.0
    %1082 = vmatpush.xpose.msra.mxu0 0.0
    %1083 = vmatpush.xpose.msra.mxu0 0.0
    %1084 = vmatpush.xpose.msra.mxu0 0.0
    %1085 = vmatpush.xpose.msra.mxu0 0.0
    %1086 = vmatpush.xpose.msra.mxu0 0.0
    %1087 = vmatpush.xpose.msra.mxu0 %v1071
    %1088 = vmatpush.xpose.msra.mxu0 %v1069
    %1089 = vmatmul.f32.gmra.mxu0 %v1065
    %v1090 = vpop.f32.mrf.mxu0
    %v1091 = vadd.f32 %v455, %v1090
    %1092 = vmatmul.f32.gmra.mxu0 %v1067
    %v1093 = vpop.f32.mrf.mxu0
    %v1094 = vadd.f32 %v456, %v1093
    %1095 = vdwg.mxu0
    %v1096 = vsel %vm509, %v1091, -inf
    %1097 = vmax.xlane.f32.xlu0 %v1096
    %v1098 = vpop.xlane.xlu0 %1097
    %v1099 = vsel %vm509, %v1094, -inf
    %1100 = vmax.xlane.f32.xlu0 %v1099
    %v1101 = vpop.xlane.xlu0 %1100
    %v1102 = vsub.f32 %v1091, %v1098
    %v1103 = vsub.f32 %v1094, %v1101
    %v1104 = vmul.f32 %v1102, 1.442695
    %v1105 = vpow.pop %v1104
    %v1106 = vmul.f32 %v1103, 1.442695
    %v1107 = vpow.pop %v1106
    %v1108 = vsel %vm509, %v1105, 0.0
    %1109 = vadd.xlane.f32.xlu0 %v1108
    %v1110 = vpop.xlane.xlu0 %1109
    %v1111 = vsel %vm509, %v1107, 0.0
    %1112 = vadd.xlane.f32.xlu0 %v1111
    %v1113 = vpop.xlane.xlu0 %1112
    %1116 = vrot.lane.b32.xlu0 %v436, 96
    %v1117 = vpop.permute.xlu0 %1116
    %1118 = vrot.lane.b32.xlu0 %v439, 96
    %v1119 = vpop.permute.xlu0 %1118
    %v1123 = vsel %vm509, %v1105, 0
    %v1126 = vsel %vm509, %v1107, 0
    %1128 = vmatpush.msra.mxu0 0.0
    %1129 = vmatpush.msra.mxu0 0.0
    %1130 = vmatpush.msra.mxu0 0.0
    %1131 = vmatpush.msra.mxu0 0.0
    %1132 = vmatpush.msra.mxu0 0.0
    %1133 = vmatpush.msra.mxu0 0.0
    %1134 = vmatpush.msra.mxu0 0.0
    %1135 = vmatpush.msra.mxu0 0.0
    %1136 = vmatpush.msra.mxu0 0.0
    %1137 = vmatpush.msra.mxu0 0.0
    %1138 = vmatpush.msra.mxu0 0.0
    %1139 = vmatpush.msra.mxu0 0.0
    %1140 = vmatpush.msra.mxu0 0.0
    %1141 = vmatpush.msra.mxu0 0.0
    %1142 = vmatpush.msra.mxu0 %v1119
    %1143 = vmatpush.msra.mxu0 %v1117
    %1144 = vmatmul.f32.gmra.mxu0 %v1123
    %v1145 = vpop.f32.mrf.mxu0
    %v1146 = vadd.f32 0.0, %v1145
    %1147 = vmatmul.f32.gmra.mxu0 %v1126
    %v1148 = vpop.f32.mrf.mxu0
    %v1149 = vadd.f32 0.0, %v1148
    %1150 = vdwg.mxu0
    %v1151 = vrcp.pop %v1110
    %v1152 = vrcp.pop %v1113
    %v1153 = vmul.f32 %v1146, %v1151
    %v1154 = vmul.f32 %v1149, %v1152
    %v1156 = vsel %vm473, %v1153, 0
    %v1159 = vsel %vm473, %v1154, 0
    %1161 = vmatpush.msra.mxu0 0.0
    %1162 = vmatpush.msra.mxu0 0.0
    %1163 = vmatpush.msra.mxu0 0.0
    %1164 = vmatpush.msra.mxu0 0.0
    %1165 = vmatpush.msra.mxu0 0.0
    %1166 = vmatpush.msra.mxu0 0.0
    %1167 = vmatpush.msra.mxu0 0.0
    %1168 = vmatpush.msra.mxu0 0.0
    %1169 = vmatpush.msra.mxu0 0.0
    %1170 = vmatpush.msra.mxu0 0.0
    %1171 = vmatpush.msra.mxu0 0.0
    %1172 = vmatpush.msra.mxu0 0.0
    %1173 = vmatpush.msra.mxu0 %v464
    %1174 = vmatpush.msra.mxu0 %v463
    %1175 = vmatpush.msra.mxu0 %v462
    %1176 = vmatpush.msra.mxu0 %v461
    %1177 = vmatmul.f32.gmra.mxu0 %v1156
    %v1178 = vpop.f32.mrf.mxu0
    %v1179 = vadd.f32 0.0, %v1178
    %1180 = vmatmul.f32.gmra.mxu0 %v1159
    %v1181 = vpop.f32.mrf.mxu0
    %v1182 = vadd.f32 0.0, %v1181
    %1183 = vdwg.mxu0
    %v1185 = vsel %vm473, %v1055, 0
    %v1188 = vsel %vm473, %v1056, 0
    %1190 = vmatpush.msra.mxu0 0.0
    %1191 = vmatpush.msra.mxu0 0.0
    %1192 = vmatpush.msra.mxu0 0.0
    %1193 = vmatpush.msra.mxu0 0.0
    %1194 = vmatpush.msra.mxu0 0.0
    %1195 = vmatpush.msra.mxu0 0.0
    %1196 = vmatpush.msra.mxu0 0.0
    %1197 = vmatpush.msra.mxu0 0.0
    %1198 = vmatpush.msra.mxu0 0.0
    %1199 = vmatpush.msra.mxu0 0.0
    %1200 = vmatpush.msra.mxu0 0.0
    %1201 = vmatpush.msra.mxu0 0.0
    %1202 = vmatpush.msra.mxu0 %v460
    %1203 = vmatpush.msra.mxu0 %v459
    %1204 = vmatpush.msra.mxu0 %v458
    %1205 = vmatpush.msra.mxu0 %v457
    %1206 = vmatmul.f32.gmra.mxu0 %v1185
    %v1207 = vpop.f32.mrf.mxu0
    %v1208 = vadd.f32 %v1179, %v1207
    %1209 = vmatmul.f32.gmra.mxu0 %v1188
    %v1210 = vpop.f32.mrf.mxu0
    %v1211 = vadd.f32 %v1182, %v1210
    %1212 = vdwg.mxu0
    %1213 = vrot.lane.b32.xlu0 %v443, 64
    %v1214 = vpop.permute.xlu0 %1213
    %1215 = vrot.lane.b32.xlu0 %v444, 64
    %v1216 = vpop.permute.xlu0 %1215
    %1217 = vrot.lane.b32.xlu0 %v407, 64
    %v1218 = vpop.permute.xlu0 %1217
    %1219 = vrot.lane.b32.xlu0 %v410, 64
    %v1220 = vpop.permute.xlu0 %1219
    %v1221 = vsel %vm473, %v1214, 0
    %v1223 = vsel %vm473, %v1216, 0
    %v1225 = vsel %vm473, %v1218, 0
    %v1227 = vsel %vm473, %v1220, 0
    %1229 = vmatpush.xpose.msra.mxu0 0.0
    %1230 = vmatpush.xpose.msra.mxu0 0.0
    %1231 = vmatpush.xpose.msra.mxu0 0.0
    %1232 = vmatpush.xpose.msra.mxu0 0.0
    %1233 = vmatpush.xpose.msra.mxu0 0.0
    %1234 = vmatpush.xpose.msra.mxu0 0.0
    %1235 = vmatpush.xpose.msra.mxu0 0.0
    %1236 = vmatpush.xpose.msra.mxu0 0.0
    %1237 = vmatpush.xpose.msra.mxu0 0.0
    %1238 = vmatpush.xpose.msra.mxu0 0.0
    %1239 = vmatpush.xpose.msra.mxu0 0.0
    %1240 = vmatpush.xpose.msra.mxu0 0.0
    %1241 = vmatpush.xpose.msra.mxu0 0.0
    %1242 = vmatpush.xpose.msra.mxu0 0.0
    %1243 = vmatpush.xpose.msra.mxu0 %v1227
    %1244 = vmatpush.xpose.msra.mxu0 %v1225
    %1245 = vmatmul.f32.gmra.mxu0 %v1221
    %v1246 = vpop.f32.mrf.mxu0
    %v1247 = vadd.f32 %v455, %v1246
    %1248 = vmatmul.f32.gmra.mxu0 %v1223
    %v1249 = vpop.f32.mrf.mxu0
    %v1250 = vadd.f32 %v456, %v1249
    %1251 = vdwg.mxu0
    %v1252 = vsel %vm509, %v1247, -inf
    %1253 = vmax.xlane.f32.xlu0 %v1252
    %v1254 = vpop.xlane.xlu0 %1253
    %v1255 = vsel %vm509, %v1250, -inf
    %1256 = vmax.xlane.f32.xlu0 %v1255
    %v1257 = vpop.xlane.xlu0 %1256
    %v1258 = vsub.f32 %v1247, %v1254
    %v1259 = vsub.f32 %v1250, %v1257
    %v1260 = vmul.f32 %v1258, 1.442695
    %v1261 = vpow.pop %v1260
    %v1262 = vmul.f32 %v1259, 1.442695
    %v1263 = vpow.pop %v1262
    %v1264 = vsel %vm509, %v1261, 0.0
    %1265 = vadd.xlane.f32.xlu0 %v1264
    %v1266 = vpop.xlane.xlu0 %1265
    %v1267 = vsel %vm509, %v1263, 0.0
    %1268 = vadd.xlane.f32.xlu0 %v1267
    %v1269 = vpop.xlane.xlu0 %1268
    %1270 = vrot.lane.b32.xlu0 %v436, 64
    %v1271 = vpop.permute.xlu0 %1270
    %1272 = vrot.lane.b32.xlu0 %v439, 64
    %v1273 = vpop.permute.xlu0 %1272
    %v1277 = vsel %vm509, %v1261, 0
    %v1280 = vsel %vm509, %v1263, 0
    %1282 = vmatpush.msra.mxu0 0.0
    %1283 = vmatpush.msra.mxu0 0.0
    %1284 = vmatpush.msra.mxu0 0.0
    %1285 = vmatpush.msra.mxu0 0.0
    %1286 = vmatpush.msra.mxu0 0.0
    %1287 = vmatpush.msra.mxu0 0.0
    %1288 = vmatpush.msra.mxu0 0.0
    %1289 = vmatpush.msra.mxu0 0.0
    %1290 = vmatpush.msra.mxu0 0.0
    %1291 = vmatpush.msra.mxu0 0.0
    %1292 = vmatpush.msra.mxu0 0.0
    %1293 = vmatpush.msra.mxu0 0.0
    %1294 = vmatpush.msra.mxu0 0.0
    %1295 = vmatpush.msra.mxu0 0.0
    %1296 = vmatpush.msra.mxu0 %v1273
    %1297 = vmatpush.msra.mxu0 %v1271
    %1298 = vmatmul.f32.gmra.mxu0 %v1277
    %v1299 = vpop.f32.mrf.mxu0
    %v1300 = vadd.f32 0.0, %v1299
    %1301 = vmatmul.f32.gmra.mxu0 %v1280
    %v1302 = vpop.f32.mrf.mxu0
    %v1303 = vadd.f32 0.0, %v1302
    %1304 = vdwg.mxu0
    %v1305 = vrcp.pop %v1266
    %v1306 = vrcp.pop %v1269
    %v1307 = vmul.f32 %v1300, %v1305
    %v1308 = vmul.f32 %v1303, %v1306
    %v1310 = vsel %vm473, %v1307, 0
    %v1313 = vsel %vm473, %v1308, 0
    %1315 = vmatpush.msra.mxu0 0.0
    %1316 = vmatpush.msra.mxu0 0.0
    %1317 = vmatpush.msra.mxu0 0.0
    %1318 = vmatpush.msra.mxu0 0.0
    %1319 = vmatpush.msra.mxu0 0.0
    %1320 = vmatpush.msra.mxu0 0.0
    %1321 = vmatpush.msra.mxu0 0.0
    %1322 = vmatpush.msra.mxu0 0.0
    %1323 = vmatpush.msra.mxu0 0.0
    %1324 = vmatpush.msra.mxu0 0.0
    %1325 = vmatpush.msra.mxu0 0.0
    %1326 = vmatpush.msra.mxu0 0.0
    %1327 = vmatpush.msra.mxu0 %v468
    %1328 = vmatpush.msra.mxu0 %v467
    %1329 = vmatpush.msra.mxu0 %v466
    %1330 = vmatpush.msra.mxu0 %v465
    %1331 = vmatmul.f32.gmra.mxu0 %v1310
    %v1332 = vpop.f32.mrf.mxu0
    %v1333 = vadd.f32 0.0, %v1332
    %1334 = vmatmul.f32.gmra.mxu0 %v1313
    %v1335 = vpop.f32.mrf.mxu0
    %v1336 = vadd.f32 0.0, %v1335
    %1337 = vdwg.mxu0
    %v1338 = vadd.f32 %v1208, %v1333
    %v1339 = vadd.f32 %v1211, %v1336
    %1340 = vrot.lane.b32.xlu0 %v443, 32
    %v1341 = vpop.permute.xlu0 %1340
    %1342 = vrot.lane.b32.xlu0 %v444, 32
    %v1343 = vpop.permute.xlu0 %1342
    %1344 = vrot.lane.b32.xlu0 %v407, 32
    %v1345 = vpop.permute.xlu0 %1344
    %1346 = vrot.lane.b32.xlu0 %v410, 32
    %v1347 = vpop.permute.xlu0 %1346
    %v1348 = vsel %vm473, %v1341, 0
    %v1350 = vsel %vm473, %v1343, 0
    %v1352 = vsel %vm473, %v1345, 0
    %v1354 = vsel %vm473, %v1347, 0
    %1356 = vmatpush.xpose.msra.mxu0 0.0
    %1357 = vmatpush.xpose.msra.mxu0 0.0
    %1358 = vmatpush.xpose.msra.mxu0 0.0
    %1359 = vmatpush.xpose.msra.mxu0 0.0
    %1360 = vmatpush.xpose.msra.mxu0 0.0
    %1361 = vmatpush.xpose.msra.mxu0 0.0
    %1362 = vmatpush.xpose.msra.mxu0 0.0
    %1363 = vmatpush.xpose.msra.mxu0 0.0
    %1364 = vmatpush.xpose.msra.mxu0 0.0
    %1365 = vmatpush.xpose.msra.mxu0 0.0
    %1366 = vmatpush.xpose.msra.mxu0 0.0
    %1367 = vmatpush.xpose.msra.mxu0 0.0
    %1368 = vmatpush.xpose.msra.mxu0 0.0
    %1369 = vmatpush.xpose.msra.mxu0 0.0
    %1370 = vmatpush.xpose.msra.mxu0 %v1354
    %1371 = vmatpush.xpose.msra.mxu0 %v1352
    %1372 = vmatmul.f32.gmra.mxu0 %v1348
    %v1373 = vpop.f32.mrf.mxu0
    %v1374 = vadd.f32 %v455, %v1373
    %1375 = vmatmul.f32.gmra.mxu0 %v1350
    %v1376 = vpop.f32.mrf.mxu0
    %v1377 = vadd.f32 %v456, %v1376
    %1378 = vdwg.mxu0
    %v1379 = vsel %vm509, %v1374, -inf
    %1380 = vmax.xlane.f32.xlu0 %v1379
    %v1381 = vpop.xlane.xlu0 %1380
    %v1382 = vsel %vm509, %v1377, -inf
    %1383 = vmax.xlane.f32.xlu0 %v1382
    %v1384 = vpop.xlane.xlu0 %1383
    %v1385 = vsub.f32 %v1374, %v1381
    %v1386 = vsub.f32 %v1377, %v1384
    %v1387 = vmul.f32 %v1385, 1.442695
    %v1388 = vpow.pop %v1387
    %v1389 = vmul.f32 %v1386, 1.442695
    %v1390 = vpow.pop %v1389
    %v1391 = vsel %vm509, %v1388, 0.0
    %1392 = vadd.xlane.f32.xlu0 %v1391
    %v1393 = vpop.xlane.xlu0 %1392
    %v1394 = vsel %vm509, %v1390, 0.0
    %1395 = vadd.xlane.f32.xlu0 %v1394
    %v1396 = vpop.xlane.xlu0 %1395
    %1397 = vrot.lane.b32.xlu0 %v436, 32
    %v1398 = vpop.permute.xlu0 %1397
    %1399 = vrot.lane.b32.xlu0 %v439, 32
    %v1400 = vpop.permute.xlu0 %1399
    %v1404 = vsel %vm509, %v1388, 0
    %v1407 = vsel %vm509, %v1390, 0
    %1409 = vmatpush.msra.mxu0 0.0
    %1410 = vmatpush.msra.mxu0 0.0
    %1411 = vmatpush.msra.mxu0 0.0
    %1412 = vmatpush.msra.mxu0 0.0
    %1413 = vmatpush.msra.mxu0 0.0
    %1414 = vmatpush.msra.mxu0 0.0
    %1415 = vmatpush.msra.mxu0 0.0
    %1416 = vmatpush.msra.mxu0 0.0
    %1417 = vmatpush.msra.mxu0 0.0
    %1418 = vmatpush.msra.mxu0 0.0
    %1419 = vmatpush.msra.mxu0 0.0
    %1420 = vmatpush.msra.mxu0 0.0
    %1421 = vmatpush.msra.mxu0 0.0
    %1422 = vmatpush.msra.mxu0 0.0
    %1423 = vmatpush.msra.mxu0 %v1400
    %1424 = vmatpush.msra.mxu0 %v1398
    %1425 = vmatmul.f32.gmra.mxu0 %v1404
    %v1426 = vpop.f32.mrf.mxu0
    %v1427 = vadd.f32 0.0, %v1426
    %1428 = vmatmul.f32.gmra.mxu0 %v1407
    %v1429 = vpop.f32.mrf.mxu0
    %v1430 = vadd.f32 0.0, %v1429
    %1431 = vdwg.mxu0
    %v1432 = vrcp.pop %v1393
    %v1433 = vrcp.pop %v1396
    %v1434 = vmul.f32 %v1427, %v1432
    %v1435 = vmul.f32 %v1430, %v1433
    %v1437 = vsel %vm473, %v1434, 0
    %v1440 = vsel %vm473, %v1435, 0
    %1442 = vmatpush.msra.mxu0 0.0
    %1443 = vmatpush.msra.mxu0 0.0
    %1444 = vmatpush.msra.mxu0 0.0
    %1445 = vmatpush.msra.mxu0 0.0
    %1446 = vmatpush.msra.mxu0 0.0
    %1447 = vmatpush.msra.mxu0 0.0
    %1448 = vmatpush.msra.mxu0 0.0
    %1449 = vmatpush.msra.mxu0 0.0
    %1450 = vmatpush.msra.mxu0 0.0
    %1451 = vmatpush.msra.mxu0 0.0
    %1452 = vmatpush.msra.mxu0 0.0
    %1453 = vmatpush.msra.mxu0 0.0
    %1454 = vmatpush.msra.mxu0 %v472
    %1455 = vmatpush.msra.mxu0 %v471
    %1456 = vmatpush.msra.mxu0 %v470
    %1457 = vmatpush.msra.mxu0 %v469
    %1458 = vmatmul.f32.gmra.mxu0 %v1437
    %v1459 = vpop.f32.mrf.mxu0
    %v1460 = vadd.f32 0.0, %v1459
    %1461 = vmatmul.f32.gmra.mxu0 %v1440
    %v1462 = vpop.f32.mrf.mxu0
    %v1463 = vadd.f32 0.0, %v1462
    %1464 = vdwg.mxu0
    %v1465 = vadd.f32 %v1338, %v1460
    %v1466 = vadd.f32 %v1339, %v1463
    %v1467 = vld [vmem:[#allocation11] sm:$0x1]
    %v1469 = vperm.slane %v1467, 0
    %v1471 = vadd.f32 %v969, %v1469
    %v1472 = vadd.f32 %v970, %v1469
    %v1473 = vadd.f32 %v1465, %v1469
    %v1474 = vadd.f32 %v1466, %v1469
    %v1475 = vadd.f32 %v191, %v1471
    %v1476 = vadd.f32 %v192, %v1472
    %v1477 = vadd.f32 %v193, %v1473
    %v1478 = vadd.f32 %v194, %v1474
    %v1479 = vld [vmem:[#allocation13] sm:$0x1]
    %v1480 = vld [vmem:[#allocation14] sm:$0x1]
    %1481 = vadd.xlane.f32.xlu0 %v1475
    %v1482 = vpop.xlane.xlu0 %1481
    %1483 = vadd.xlane.f32.xlu0 %v1476
    %v1484 = vpop.xlane.xlu0 %1483
    %1485 = vadd.xlane.f32.xlu0 %v1477
    %v1486 = vpop.xlane.xlu0 %1485
    %1487 = vadd.xlane.f32.xlu0 %v1478
    %v1488 = vpop.xlane.xlu0 %1487
    %v1489 = vmul.f32 %v1482, %v211
    %v1490 = vmul.f32 %v1484, %v211
    %v1491 = vmul.f32 %v1486, %v211
    %v1492 = vmul.f32 %v1488, %v211
    %v1493 = vsub.f32 %v1475, %v1489
    %v1494 = vsub.f32 %v1476, %v1490
    %v1495 = vsub.f32 %v1477, %v1491
    %v1496 = vsub.f32 %v1478, %v1492
    %v1497 = vmul.f32 %v1493, %v1493
    %v1498 = vmul.f32 %v1494, %v1494
    %v1499 = vmul.f32 %v1495, %v1495
    %v1500 = vmul.f32 %v1496, %v1496
    %1501 = vadd.xlane.f32.xlu0 %v1497
    %v1502 = vpop.xlane.xlu0 %1501
    %1503 = vadd.xlane.f32.xlu0 %v1498
    %v1504 = vpop.xlane.xlu0 %1503
    %1505 = vadd.xlane.f32.xlu0 %v1499
    %v1506 = vpop.xlane.xlu0 %1505
    %1507 = vadd.xlane.f32.xlu0 %v1500
    %v1508 = vpop.xlane.xlu0 %1507
    %v1509 = vmul.f32 %v1502, %v211
    %v1510 = vmul.f32 %v1504, %v211
    %v1511 = vmul.f32 %v1506, %v211
    %v1512 = vmul.f32 %v1508, %v211
    %v1513 = vadd.f32 %v1509, 1e-05
    %v1514 = vadd.f32 %v1510, 1e-05
    %v1515 = vadd.f32 %v1511, 1e-05
    %v1516 = vadd.f32 %v1512, 1e-05
    %v1517 = vrsqrt.pop %v1513
    %v1518 = vmul.f32 %v1517, %v1513
    %v1519 = vmul.f32 %v1518, %v1517
    %v1520 = vmul.f32 0.5, %v1519
    %v1521 = vsub.f32 1.5, %v1520
    %v1522 = vmul.f32 %v1517, %v1521
    %vm1523 = vweird.f32 %v1513
    %vm1524 = vweird.f32 %v1517
    %vm1525 = vmor %vm1523, %vm1524
    %v1526 = vsel %vm1525, %v1517, %v1522
    %v1527 = vrsqrt.pop %v1514
    %v1528 = vmul.f32 %v1527, %v1514
    %v1529 = vmul.f32 %v1528, %v1527
    %v1530 = vmul.f32 0.5, %v1529
    %v1531 = vsub.f32 1.5, %v1530
    %v1532 = vmul.f32 %v1527, %v1531
    %vm1533 = vweird.f32 %v1514
    %vm1534 = vweird.f32 %v1527
    %vm1535 = vmor %vm1533, %vm1534
    %v1536 = vsel %vm1535, %v1527, %v1532
    %v1537 = vrsqrt.pop %v1515
    %v1538 = vmul.f32 %v1537, %v1515
    %v1539 = vmul.f32 %v1538, %v1537
    %v1540 = vmul.f32 0.5, %v1539
    %v1541 = vsub.f32 1.5, %v1540
    %v1542 = vmul.f32 %v1537, %v1541
    %vm1543 = vweird.f32 %v1515
    %vm1544 = vweird.f32 %v1537
    %vm1545 = vmor %vm1543, %vm1544
    %v1546 = vsel %vm1545, %v1537, %v1542
    %v1547 = vrsqrt.pop %v1516
    %v1548 = vmul.f32 %v1547, %v1516
    %v1549 = vmul.f32 %v1548, %v1547
    %v1550 = vmul.f32 0.5, %v1549
    %v1551 = vsub.f32 1.5, %v1550
    %v1552 = vmul.f32 %v1547, %v1551
    %vm1553 = vweird.f32 %v1516
    %vm1554 = vweird.f32 %v1547
    %vm1555 = vmor %vm1553, %vm1554
    %v1556 = vsel %vm1555, %v1547, %v1552
    %v1557 = vmul.f32 %v1493, %v1526
    %v1558 = vmul.f32 %v1494, %v1536
    %v1559 = vmul.f32 %v1495, %v1546
    %v1560 = vmul.f32 %v1496, %v1556
    %v1562 = vperm.slane %v1479, 0
    %v1564 = vmul.f32 %v1557, %v1562
    %v1565 = vmul.f32 %v1558, %v1562
    %v1566 = vmul.f32 %v1559, %v1562
    %v1567 = vmul.f32 %v1560, %v1562
    %v1569 = vperm.slane %v1480, 0
    %v1571 = vadd.f32 %v1564, %v1569
    %v1572 = vadd.f32 %v1565, %v1569
    %v1573 = vadd.f32 %v1566, %v1569
    %v1574 = vadd.f32 %v1567, %v1569
    %v1575 = vld [vmem:[#allocation16] sm:$0xff]
    %v1576 = vld [vmem:[#allocation16 + $0x8] sm:$0xff]
    %v1577 = vld [vmem:[#allocation16 + $0x10] sm:$0xff]
    %v1578 = vld [vmem:[#allocation16 + $0x18] sm:$0xff]
    %v1579 = vld [vmem:[#allocation16 + $0x20] sm:$0xff]
    %v1580 = vld [vmem:[#allocation16 + $0x28] sm:$0xff]
    %v1581 = vld [vmem:[#allocation16 + $0x30] sm:$0xff]
    %v1582 = vld [vmem:[#allocation16 + $0x38] sm:$0xff]
    %v1583 = vld [vmem:[#allocation16 + $0x40] sm:$0xff]
    %v1584 = vld [vmem:[#allocation16 + $0x48] sm:$0xff]
    %v1585 = vld [vmem:[#allocation16 + $0x50] sm:$0xff]
    %v1586 = vld [vmem:[#allocation16 + $0x58] sm:$0xff]
    %v1587 = vld [vmem:[#allocation16 + $0x60] sm:$0xff]
    %v1588 = vld [vmem:[#allocation16 + $0x68] sm:$0xff]
    %v1589 = vld [vmem:[#allocation16 + $0x70] sm:$0xff]
    %v1590 = vld [vmem:[#allocation16 + $0x78] sm:$0xff]
    %v1591 = vld [vmem:[#allocation16 + $0x80] sm:$0xff]
    %v1592 = vld [vmem:[#allocation16 + $0x88] sm:$0xff]
    %v1593 = vld [vmem:[#allocation16 + $0x90] sm:$0xff]
    %v1594 = vld [vmem:[#allocation16 + $0x98] sm:$0xff]
    %v1595 = vld [vmem:[#allocation16 + $0xa0] sm:$0xff]
    %v1596 = vld [vmem:[#allocation16 + $0xa8] sm:$0xff]
    %v1597 = vld [vmem:[#allocation16 + $0xb0] sm:$0xff]
    %v1598 = vld [vmem:[#allocation16 + $0xb8] sm:$0xff]
    %v1599 = vld [vmem:[#allocation16 + $0xc0] sm:$0xff]
    %v1600 = vld [vmem:[#allocation16 + $0xc8] sm:$0xff]
    %v1601 = vld [vmem:[#allocation16 + $0xd0] sm:$0xff]
    %v1602 = vld [vmem:[#allocation16 + $0xd8] sm:$0xff]
    %v1603 = vld [vmem:[#allocation16 + $0xe0] sm:$0xff]
    %v1604 = vld [vmem:[#allocation16 + $0xe8] sm:$0xff]
    %v1605 = vld [vmem:[#allocation16 + $0xf0] sm:$0xff]
    %v1606 = vld [vmem:[#allocation16 + $0xf8] sm:$0xff]
    %v1607 = vld [vmem:[#allocation16 + $0x100] sm:$0xff]
    %v1608 = vld [vmem:[#allocation16 + $0x108] sm:$0xff]
    %v1609 = vld [vmem:[#allocation16 + $0x110] sm:$0xff]
    %v1610 = vld [vmem:[#allocation16 + $0x118] sm:$0xff]
    %v1611 = vld [vmem:[#allocation16 + $0x120] sm:$0xff]
    %v1612 = vld [vmem:[#allocation16 + $0x128] sm:$0xff]
    %v1613 = vld [vmem:[#allocation16 + $0x130] sm:$0xff]
    %v1614 = vld [vmem:[#allocation16 + $0x138] sm:$0xff]
    %v1615 = vld [vmem:[#allocation16 + $0x140] sm:$0xff]
    %v1616 = vld [vmem:[#allocation16 + $0x148] sm:$0xff]
    %v1617 = vld [vmem:[#allocation16 + $0x150] sm:$0xff]
    %v1618 = vld [vmem:[#allocation16 + $0x158] sm:$0xff]
    %v1619 = vld [vmem:[#allocation16 + $0x160] sm:$0xff]
    %v1620 = vld [vmem:[#allocation16 + $0x168] sm:$0xff]
    %v1621 = vld [vmem:[#allocation16 + $0x170] sm:$0xff]
    %v1622 = vld [vmem:[#allocation16 + $0x178] sm:$0xff]
    %v1623 = vld [vmem:[#allocation16 + $0x180] sm:$0xff]
    %v1624 = vld [vmem:[#allocation16 + $0x188] sm:$0xff]
    %v1625 = vld [vmem:[#allocation16 + $0x190] sm:$0xff]
    %v1626 = vld [vmem:[#allocation16 + $0x198] sm:$0xff]
    %v1627 = vld [vmem:[#allocation16 + $0x1a0] sm:$0xff]
    %v1628 = vld [vmem:[#allocation16 + $0x1a8] sm:$0xff]
    %v1629 = vld [vmem:[#allocation16 + $0x1b0] sm:$0xff]
    %v1630 = vld [vmem:[#allocation16 + $0x1b8] sm:$0xff]
    %v1631 = vld [vmem:[#allocation16 + $0x1c0] sm:$0xff]
    %v1632 = vld [vmem:[#allocation16 + $0x1c8] sm:$0xff]
    %v1633 = vld [vmem:[#allocation16 + $0x1d0] sm:$0xff]
    %v1634 = vld [vmem:[#allocation16 + $0x1d8] sm:$0xff]
    %v1635 = vld [vmem:[#allocation16 + $0x1e0] sm:$0xff]
    %v1636 = vld [vmem:[#allocation16 + $0x1e8] sm:$0xff]
    %v1637 = vld [vmem:[#allocation16 + $0x1f0] sm:$0xff]
    %v1638 = vld [vmem:[#allocation16 + $0x1f8] sm:$0xff]
    %v1639 = vld [vmem:[%s10] sm:$0xf]
    %v1641 = vperm.slane %v1639, 0
    %v1642 = vperm.slane %v1639, 1
    %v1643 = vperm.slane %v1639, 2
    %v1644 = vperm.slane %v1639, 3
    %1649 = vmatpush.msra.mxu0 %v1635
    %1650 = vmatpush.msra.mxu0 %v1631
    %1651 = vmatpush.msra.mxu0 %v1627
    %1652 = vmatpush.msra.mxu0 %v1623
    %1653 = vmatpush.msra.mxu0 %v1619
    %1654 = vmatpush.msra.mxu0 %v1615
    %1655 = vmatpush.msra.mxu0 %v1611
    %1656 = vmatpush.msra.mxu0 %v1607
    %1657 = vmatpush.msra.mxu0 %v1603
    %1658 = vmatpush.msra.mxu0 %v1599
    %1659 = vmatpush.msra.mxu0 %v1595
    %1660 = vmatpush.msra.mxu0 %v1591
    %1661 = vmatpush.msra.mxu0 %v1587
    %1662 = vmatpush.msra.mxu0 %v1583
    %1663 = vmatpush.msra.mxu0 %v1579
    %1664 = vmatpush.msra.mxu0 %v1575
    %1665 = vmatmul.f32.gmra.mxu0 %v1571
    %v1666 = vpop.f32.mrf.mxu0
    %v1667 = vadd.f32 %v1641, %v1666
    %1668 = vmatmul.f32.gmra.mxu0 %v1572
    %v1669 = vpop.f32.mrf.mxu0
    %v1670 = vadd.f32 %v1641, %v1669
    %1671 = vmatmul.f32.gmra.mxu0 %v1573
    %v1672 = vpop.f32.mrf.mxu0
    %v1673 = vadd.f32 %v1641, %v1672
    %1674 = vmatmul.f32.gmra.mxu0 %v1574
    %v1675 = vpop.f32.mrf.mxu0
    %v1676 = vadd.f32 %v1641, %v1675
    %1677 = vdwg.mxu0
    %1678 = vmatpush.msra.mxu0 %v1636
    %1679 = vmatpush.msra.mxu0 %v1632
    %1680 = vmatpush.msra.mxu0 %v1628
    %1681 = vmatpush.msra.mxu0 %v1624
    %1682 = vmatpush.msra.mxu0 %v1620
    %1683 = vmatpush.msra.mxu0 %v1616
    %1684 = vmatpush.msra.mxu0 %v1612
    %1685 = vmatpush.msra.mxu0 %v1608
    %1686 = vmatpush.msra.mxu0 %v1604
    %1687 = vmatpush.msra.mxu0 %v1600
    %1688 = vmatpush.msra.mxu0 %v1596
    %1689 = vmatpush.msra.mxu0 %v1592
    %1690 = vmatpush.msra.mxu0 %v1588
    %1691 = vmatpush.msra.mxu0 %v1584
    %1692 = vmatpush.msra.mxu0 %v1580
    %1693 = vmatpush.msra.mxu0 %v1576
    %1694 = vmatmul.f32.gmra.mxu0 %v1571
    %v1695 = vpop.f32.mrf.mxu0
    %v1696 = vadd.f32 %v1642, %v1695
    %1697 = vmatmul.f32.gmra.mxu0 %v1572
    %v1698 = vpop.f32.mrf.mxu0
    %v1699 = vadd.f32 %v1642, %v1698
    %1700 = vmatmul.f32.gmra.mxu0 %v1573
    %v1701 = vpop.f32.mrf.mxu0
    %v1702 = vadd.f32 %v1642, %v1701
    %1703 = vmatmul.f32.gmra.mxu0 %v1574
    %v1704 = vpop.f32.mrf.mxu0
    %v1705 = vadd.f32 %v1642, %v1704
    %1706 = vdwg.mxu0
    %1707 = vmatpush.msra.mxu0 %v1637
    %1708 = vmatpush.msra.mxu0 %v1633
    %1709 = vmatpush.msra.mxu0 %v1629
    %1710 = vmatpush.msra.mxu0 %v1625
    %1711 = vmatpush.msra.mxu0 %v1621
    %1712 = vmatpush.msra.mxu0 %v1617
    %1713 = vmatpush.msra.mxu0 %v1613
    %1714 = vmatpush.msra.mxu0 %v1609
    %1715 = vmatpush.msra.mxu0 %v1605
    %1716 = vmatpush.msra.mxu0 %v1601
    %1717 = vmatpush.msra.mxu0 %v1597
    %1718 = vmatpush.msra.mxu0 %v1593
    %1719 = vmatpush.msra.mxu0 %v1589
    %1720 = vmatpush.msra.mxu0 %v1585
    %1721 = vmatpush.msra.mxu0 %v1581
    %1722 = vmatpush.msra.mxu0 %v1577
    %1723 = vmatmul.f32.gmra.mxu0 %v1571
    %v1724 = vpop.f32.mrf.mxu0
    %v1725 = vadd.f32 %v1643, %v1724
    %1726 = vmatmul.f32.gmra.mxu0 %v1572
    %v1727 = vpop.f32.mrf.mxu0
    %v1728 = vadd.f32 %v1643, %v1727
    %1729 = vmatmul.f32.gmra.mxu0 %v1573
    %v1730 = vpop.f32.mrf.mxu0
    %v1731 = vadd.f32 %v1643, %v1730
    %1732 = vmatmul.f32.gmra.mxu0 %v1574
    %v1733 = vpop.f32.mrf.mxu0
    %v1734 = vadd.f32 %v1643, %v1733
    %1735 = vdwg.mxu0
    %1736 = vmatpush.msra.mxu0 %v1638
    %1737 = vmatpush.msra.mxu0 %v1634
    %1738 = vmatpush.msra.mxu0 %v1630
    %1739 = vmatpush.msra.mxu0 %v1626
    %1740 = vmatpush.msra.mxu0 %v1622
    %1741 = vmatpush.msra.mxu0 %v1618
    %1742 = vmatpush.msra.mxu0 %v1614
    %1743 = vmatpush.msra.mxu0 %v1610
    %1744 = vmatpush.msra.mxu0 %v1606
    %1745 = vmatpush.msra.mxu0 %v1602
    %1746 = vmatpush.msra.mxu0 %v1598
    %1747 = vmatpush.msra.mxu0 %v1594
    %1748 = vmatpush.msra.mxu0 %v1590
    %1749 = vmatpush.msra.mxu0 %v1586
    %1750 = vmatpush.msra.mxu0 %v1582
    %1751 = vmatpush.msra.mxu0 %v1578
    %1752 = vmatmul.f32.gmra.mxu0 %v1571
    %v1753 = vpop.f32.mrf.mxu0
    %v1754 = vadd.f32 %v1644, %v1753
    %1755 = vmatmul.f32.gmra.mxu0 %v1572
    %v1756 = vpop.f32.mrf.mxu0
    %v1757 = vadd.f32 %v1644, %v1756
    %1758 = vmatmul.f32.gmra.mxu0 %v1573
    %v1759 = vpop.f32.mrf.mxu0
    %v1760 = vadd.f32 %v1644, %v1759
    %1761 = vmatmul.f32.gmra.mxu0 %v1574
    %v1762 = vpop.f32.mrf.mxu0
    %v1763 = vadd.f32 %v1644, %v1762
    %1764 = vdwg.mxu0
    %v1765 = vmul.f32 %v1667, 0.5
    %v1766 = vmul.f32 %v1696, 0.5
    %v1767 = vmul.f32 %v1725, 0.5
    %v1768 = vmul.f32 %v1754, 0.5
    %v1769 = vmul.f32 %v1670, 0.5
    %v1770 = vmul.f32 %v1699, 0.5
    %v1771 = vmul.f32 %v1728, 0.5
    %v1772 = vmul.f32 %v1757, 0.5
    %v1773 = vmul.f32 %v1673, 0.5
    %v1774 = vmul.f32 %v1702, 0.5
    %v1775 = vmul.f32 %v1731, 0.5
    %v1776 = vmul.f32 %v1760, 0.5
    %v1777 = vmul.f32 %v1676, 0.5
    %v1778 = vmul.f32 %v1705, 0.5
    %v1779 = vmul.f32 %v1734, 0.5
    %v1780 = vmul.f32 %v1763, 0.5
    %v1781 = vmul.f32 %v1667, 0.044715
    %v1782 = vmul.f32 %v1696, 0.044715
    %v1783 = vmul.f32 %v1725, 0.044715
    %v1784 = vmul.f32 %v1754, 0.044715
    %v1785 = vmul.f32 %v1670, 0.044715
    %v1786 = vmul.f32 %v1699, 0.044715
    %v1787 = vmul.f32 %v1728, 0.044715
    %v1788 = vmul.f32 %v1757, 0.044715
    %v1789 = vmul.f32 %v1673, 0.044715
    %v1790 = vmul.f32 %v1702, 0.044715
    %v1791 = vmul.f32 %v1731, 0.044715
    %v1792 = vmul.f32 %v1760, 0.044715
    %v1793 = vmul.f32 %v1676, 0.044715
    %v1794 = vmul.f32 %v1705, 0.044715
    %v1795 = vmul.f32 %v1734, 0.044715
    %v1796 = vmul.f32 %v1763, 0.044715
    %v1797 = vmul.f32 %v1781, %v1667
    %v1798 = vmul.f32 %v1782, %v1696
    %v1799 = vmul.f32 %v1783, %v1725
    %v1800 = vmul.f32 %v1784, %v1754
    %v1801 = vmul.f32 %v1785, %v1670
    %v1802 = vmul.f32 %v1786, %v1699
    %v1803 = vmul.f32 %v1787, %v1728
    %v1804 = vmul.f32 %v1788, %v1757
    %v1805 = vmul.f32 %v1789, %v1673
    %v1806 = vmul.f32 %v1790, %v1702
    %v1807 = vmul.f32 %v1791, %v1731
    %v1808 = vmul.f32 %v1792, %v1760
    %v1809 = vmul.f32 %v1793, %v1676
    %v1810 = vmul.f32 %v1794, %v1705
    %v1811 = vmul.f32 %v1795, %v1734
    %v1812 = vmul.f32 %v1796, %v1763
    %v1813 = vmul.f32 %v1797, %v1667
    %v1814 = vmul.f32 %v1798, %v1696
    %v1815 = vmul.f32 %v1799, %v1725
    %v1816 = vmul.f32 %v1800, %v1754
    %v1817 = vmul.f32 %v1801, %v1670
    %v1818 = vmul.f32 %v1802, %v1699
    %v1819 = vmul.f32 %v1803, %v1728
    %v1820 = vmul.f32 %v1804, %v1757
    %v1821 = vmul.f32 %v1805, %v1673
    %v1822 = vmul.f32 %v1806, %v1702
    %v1823 = vmul.f32 %v1807, %v1731
    %v1824 = vmul.f32 %v1808, %v1760
    %v1825 = vmul.f32 %v1809, %v1676
    %v1826 = vmul.f32 %v1810, %v1705
    %v1827 = vmul.f32 %v1811, %v1734
    %v1828 = vmul.f32 %v1812, %v1763
    %v1829 = vadd.f32 %v1667, %v1813
    %v1830 = vadd.f32 %v1696, %v1814
    %v1831 = vadd.f32 %v1725, %v1815
    %v1832 = vadd.f32 %v1754, %v1816
    %v1833 = vadd.f32 %v1670, %v1817
    %v1834 = vadd.f32 %v1699, %v1818
    %v1835 = vadd.f32 %v1728, %v1819
    %v1836 = vadd.f32 %v1757, %v1820
    %v1837 = vadd.f32 %v1673, %v1821
    %v1838 = vadd.f32 %v1702, %v1822
    %v1839 = vadd.f32 %v1731, %v1823
    %v1840 = vadd.f32 %v1760, %v1824
    %v1841 = vadd.f32 %v1676, %v1825
    %v1842 = vadd.f32 %v1705, %v1826
    %v1843 = vadd.f32 %v1734, %v1827
    %v1844 = vadd.f32 %v1763, %v1828
    %v1845 = vmul.f32 %v1829, 0.7978846
    %v1846 = vmul.f32 %v1830, 0.7978846
    %v1847 = vmul.f32 %v1831, 0.7978846
    %v1848 = vmul.f32 %v1832, 0.7978846
    %v1849 = vmul.f32 %v1833, 0.7978846
    %v1850 = vmul.f32 %v1834, 0.7978846
    %v1851 = vmul.f32 %v1835, 0.7978846
    %v1852 = vmul.f32 %v1836, 0.7978846
    %v1853 = vmul.f32 %v1837, 0.7978846
    %v1854 = vmul.f32 %v1838, 0.7978846
    %v1855 = vmul.f32 %v1839, 0.7978846
    %v1856 = vmul.f32 %v1840, 0.7978846
    %v1857 = vmul.f32 %v1841, 0.7978846
    %v1858 = vmul.f32 %v1842, 0.7978846
    %v1859 = vmul.f32 %v1843, 0.7978846
    %v1860 = vmul.f32 %v1844, 0.7978846
    %v1861 = vtanh.pop %v1845
    %v1862 = vtanh.pop %v1846
    %v1863 = vtanh.pop %v1847
    %v1864 = vtanh.pop %v1848
    %v1865 = vtanh.pop %v1849
    %v1866 = vtanh.pop %v1850
    %v1867 = vtanh.pop %v1851
    %v1868 = vtanh.pop %v1852
    %v1869 = vtanh.pop %v1853
    %v1870 = vtanh.pop %v1854
    %v1871 = vtanh.pop %v1855
    %v1872 = vtanh.pop %v1856
    %v1873 = vtanh.pop %v1857
    %v1874 = vtanh.pop %v1858
    %v1875 = vtanh.pop %v1859
    %v1876 = vtanh.pop %v1860
    %v1877 = vadd.f32 %v1861, 1.0
    %v1878 = vadd.f32 %v1862, 1.0
    %v1879 = vadd.f32 %v1863, 1.0
    %v1880 = vadd.f32 %v1864, 1.0
    %v1881 = vadd.f32 %v1865, 1.0
    %v1882 = vadd.f32 %v1866, 1.0
    %v1883 = vadd.f32 %v1867, 1.0
    %v1884 = vadd.f32 %v1868, 1.0
    %v1885 = vadd.f32 %v1869, 1.0
    %v1886 = vadd.f32 %v1870, 1.0
    %v1887 = vadd.f32 %v1871, 1.0
    %v1888 = vadd.f32 %v1872, 1.0
    %v1889 = vadd.f32 %v1873, 1.0
    %v1890 = vadd.f32 %v1874, 1.0
    %v1891 = vadd.f32 %v1875, 1.0
    %v1892 = vadd.f32 %v1876, 1.0
    %v1893 = vmul.f32 %v1765, %v1877
    %v1894 = vmul.f32 %v1766, %v1878
    %v1895 = vmul.f32 %v1767, %v1879
    %v1896 = vmul.f32 %v1768, %v1880
    %v1897 = vmul.f32 %v1769, %v1881
    %v1898 = vmul.f32 %v1770, %v1882
    %v1899 = vmul.f32 %v1771, %v1883
    %v1900 = vmul.f32 %v1772, %v1884
    %v1901 = vmul.f32 %v1773, %v1885
    %v1902 = vmul.f32 %v1774, %v1886
    %v1903 = vmul.f32 %v1775, %v1887
    %v1904 = vmul.f32 %v1776, %v1888
    %v1905 = vmul.f32 %v1777, %v1889
    %v1906 = vmul.f32 %v1778, %v1890
    %v1907 = vmul.f32 %v1779, %v1891
    %v1908 = vmul.f32 %v1780, %v1892
    %v1909 = vld [vmem:[#allocation17] sm:$0xff]
    %v1910 = vld [vmem:[#allocation17 + $0x8] sm:$0xff]
    %v1911 = vld [vmem:[#allocation17 + $0x10] sm:$0xff]
    %v1912 = vld [vmem:[#allocation17 + $0x18] sm:$0xff]
    %v1913 = vld [vmem:[#allocation17 + $0x20] sm:$0xff]
    %v1914 = vld [vmem:[#allocation17 + $0x28] sm:$0xff]
    %v1915 = vld [vmem:[#allocation17 + $0x30] sm:$0xff]
    %v1916 = vld [vmem:[#allocation17 + $0x38] sm:$0xff]
    %v1917 = vld [vmem:[#allocation17 + $0x40] sm:$0xff]
    %v1918 = vld [vmem:[#allocation17 + $0x48] sm:$0xff]
    %v1919 = vld [vmem:[#allocation17 + $0x50] sm:$0xff]
    %v1920 = vld [vmem:[#allocation17 + $0x58] sm:$0xff]
    %v1921 = vld [vmem:[#allocation17 + $0x60] sm:$0xff]
    %v1922 = vld [vmem:[#allocation17 + $0x68] sm:$0xff]
    %v1923 = vld [vmem:[#allocation17 + $0x70] sm:$0xff]
    %v1924 = vld [vmem:[#allocation17 + $0x78] sm:$0xff]
    %v1925 = vld [vmem:[#allocation17 + $0x80] sm:$0xff]
    %v1926 = vld [vmem:[#allocation17 + $0x88] sm:$0xff]
    %v1927 = vld [vmem:[#allocation17 + $0x90] sm:$0xff]
    %v1928 = vld [vmem:[#allocation17 + $0x98] sm:$0xff]
    %v1929 = vld [vmem:[#allocation17 + $0xa0] sm:$0xff]
    %v1930 = vld [vmem:[#allocation17 + $0xa8] sm:$0xff]
    %v1931 = vld [vmem:[#allocation17 + $0xb0] sm:$0xff]
    %v1932 = vld [vmem:[#allocation17 + $0xb8] sm:$0xff]
    %v1933 = vld [vmem:[#allocation17 + $0xc0] sm:$0xff]
    %v1934 = vld [vmem:[#allocation17 + $0xc8] sm:$0xff]
    %v1935 = vld [vmem:[#allocation17 + $0xd0] sm:$0xff]
    %v1936 = vld [vmem:[#allocation17 + $0xd8] sm:$0xff]
    %v1937 = vld [vmem:[#allocation17 + $0xe0] sm:$0xff]
    %v1938 = vld [vmem:[#allocation17 + $0xe8] sm:$0xff]
    %v1939 = vld [vmem:[#allocation17 + $0xf0] sm:$0xff]
    %v1940 = vld [vmem:[#allocation17 + $0xf8] sm:$0xff]
    %v1941 = vld [vmem:[#allocation17 + $0x100] sm:$0xff]
    %v1942 = vld [vmem:[#allocation17 + $0x108] sm:$0xff]
    %v1943 = vld [vmem:[#allocation17 + $0x110] sm:$0xff]
    %v1944 = vld [vmem:[#allocation17 + $0x118] sm:$0xff]
    %v1945 = vld [vmem:[#allocation17 + $0x120] sm:$0xff]
    %v1946 = vld [vmem:[#allocation17 + $0x128] sm:$0xff]
    %v1947 = vld [vmem:[#allocation17 + $0x130] sm:$0xff]
    %v1948 = vld [vmem:[#allocation17 + $0x138] sm:$0xff]
    %v1949 = vld [vmem:[#allocation17 + $0x140] sm:$0xff]
    %v1950 = vld [vmem:[#allocation17 + $0x148] sm:$0xff]
    %v1951 = vld [vmem:[#allocation17 + $0x150] sm:$0xff]
    %v1952 = vld [vmem:[#allocation17 + $0x158] sm:$0xff]
    %v1953 = vld [vmem:[#allocation17 + $0x160] sm:$0xff]
    %v1954 = vld [vmem:[#allocation17 + $0x168] sm:$0xff]
    %v1955 = vld [vmem:[#allocation17 + $0x170] sm:$0xff]
    %v1956 = vld [vmem:[#allocation17 + $0x178] sm:$0xff]
    %v1957 = vld [vmem:[#allocation17 + $0x180] sm:$0xff]
    %v1958 = vld [vmem:[#allocation17 + $0x188] sm:$0xff]
    %v1959 = vld [vmem:[#allocation17 + $0x190] sm:$0xff]
    %v1960 = vld [vmem:[#allocation17 + $0x198] sm:$0xff]
    %v1961 = vld [vmem:[#allocation17 + $0x1a0] sm:$0xff]
    %v1962 = vld [vmem:[#allocation17 + $0x1a8] sm:$0xff]
    %v1963 = vld [vmem:[#allocation17 + $0x1b0] sm:$0xff]
    %v1964 = vld [vmem:[#allocation17 + $0x1b8] sm:$0xff]
    %v1965 = vld [vmem:[#allocation17 + $0x1c0] sm:$0xff]
    %v1966 = vld [vmem:[#allocation17 + $0x1c8] sm:$0xff]
    %v1967 = vld [vmem:[#allocation17 + $0x1d0] sm:$0xff]
    %v1968 = vld [vmem:[#allocation17 + $0x1d8] sm:$0xff]
    %v1969 = vld [vmem:[#allocation17 + $0x1e0] sm:$0xff]
    %v1970 = vld [vmem:[#allocation17 + $0x1e8] sm:$0xff]
    %v1971 = vld [vmem:[#allocation17 + $0x1f0] sm:$0xff]
    %v1972 = vld [vmem:[#allocation17 + $0x1f8] sm:$0xff]
    %v1973 = vld [vmem:[%s12] sm:$0x1]
    %v1975 = vperm.slane %v1973, 0
    %1977 = vmatpush.msra.mxu0 %v1924
    %1978 = vmatpush.msra.mxu0 %v1923
    %1979 = vmatpush.msra.mxu0 %v1922
    %1980 = vmatpush.msra.mxu0 %v1921
    %1981 = vmatpush.msra.mxu0 %v1920
    %1982 = vmatpush.msra.mxu0 %v1919
    %1983 = vmatpush.msra.mxu0 %v1918
    %1984 = vmatpush.msra.mxu0 %v1917
    %1985 = vmatpush.msra.mxu0 %v1916
    %1986 = vmatpush.msra.mxu0 %v1915
    %1987 = vmatpush.msra.mxu0 %v1914
    %1988 = vmatpush.msra.mxu0 %v1913
    %1989 = vmatpush.msra.mxu0 %v1912
    %1990 = vmatpush.msra.mxu0 %v1911
    %1991 = vmatpush.msra.mxu0 %v1910
    %1992 = vmatpush.msra.mxu0 %v1909
    %1993 = vmatmul.f32.gmra.mxu0 %v1893
    %v1994 = vpop.f32.mrf.mxu0
    %v1995 = vadd.f32 %v1975, %v1994
    %1996 = vmatmul.f32.gmra.mxu0 %v1897
    %v1997 = vpop.f32.mrf.mxu0
    %v1998 = vadd.f32 %v1975, %v1997
    %1999 = vmatmul.f32.gmra.mxu0 %v1901
    %v2000 = vpop.f32.mrf.mxu0
    %v2001 = vadd.f32 %v1975, %v2000
    %2002 = vmatmul.f32.gmra.mxu0 %v1905
    %v2003 = vpop.f32.mrf.mxu0
    %v2004 = vadd.f32 %v1975, %v2003
    %2005 = vdwg.mxu0
    %2006 = vmatpush.msra.mxu0 %v1940
    %2007 = vmatpush.msra.mxu0 %v1939
    %2008 = vmatpush.msra.mxu0 %v1938
    %2009 = vmatpush.msra.mxu0 %v1937
    %2010 = vmatpush.msra.mxu0 %v1936
    %2011 = vmatpush.msra.mxu0 %v1935
    %2012 = vmatpush.msra.mxu0 %v1934
    %2013 = vmatpush.msra.mxu0 %v1933
    %2014 = vmatpush.msra.mxu0 %v1932
    %2015 = vmatpush.msra.mxu0 %v1931
    %2016 = vmatpush.msra.mxu0 %v1930
    %2017 = vmatpush.msra.mxu0 %v1929
    %2018 = vmatpush.msra.mxu0 %v1928
    %2019 = vmatpush.msra.mxu0 %v1927
    %2020 = vmatpush.msra.mxu0 %v1926
    %2021 = vmatpush.msra.mxu0 %v1925
    %2022 = vmatmul.f32.gmra.mxu0 %v1894
    %v2023 = vpop.f32.mrf.mxu0
    %v2024 = vadd.f32 %v1995, %v2023
    %2025 = vmatmul.f32.gmra.mxu0 %v1898
    %v2026 = vpop.f32.mrf.mxu0
    %v2027 = vadd.f32 %v1998, %v2026
    %2028 = vmatmul.f32.gmra.mxu0 %v1902
    %v2029 = vpop.f32.mrf.mxu0
    %v2030 = vadd.f32 %v2001, %v2029
    %2031 = vmatmul.f32.gmra.mxu0 %v1906
    %v2032 = vpop.f32.mrf.mxu0
    %v2033 = vadd.f32 %v2004, %v2032
    %2034 = vdwg.mxu0
    %2035 = vmatpush.msra.mxu0 %v1956
    %2036 = vmatpush.msra.mxu0 %v1955
    %2037 = vmatpush.msra.mxu0 %v1954
    %2038 = vmatpush.msra.mxu0 %v1953
    %2039 = vmatpush.msra.mxu0 %v1952
    %2040 = vmatpush.msra.mxu0 %v1951
    %2041 = vmatpush.msra.mxu0 %v1950
    %2042 = vmatpush.msra.mxu0 %v1949
    %2043 = vmatpush.msra.mxu0 %v1948
    %2044 = vmatpush.msra.mxu0 %v1947
    %2045 = vmatpush.msra.mxu0 %v1946
    %2046 = vmatpush.msra.mxu0 %v1945
    %2047 = vmatpush.msra.mxu0 %v1944
    %2048 = vmatpush.msra.mxu0 %v1943
    %2049 = vmatpush.msra.mxu0 %v1942
    %2050 = vmatpush.msra.mxu0 %v1941
    %2051 = vmatmul.f32.gmra.mxu0 %v1895
    %v2052 = vpop.f32.mrf.mxu0
    %v2053 = vadd.f32 %v2024, %v2052
    %2054 = vmatmul.f32.gmra.mxu0 %v1899
    %v2055 = vpop.f32.mrf.mxu0
    %v2056 = vadd.f32 %v2027, %v2055
    %2057 = vmatmul.f32.gmra.mxu0 %v1903
    %v2058 = vpop.f32.mrf.mxu0
    %v2059 = vadd.f32 %v2030, %v2058
    %2060 = vmatmul.f32.gmra.mxu0 %v1907
    %v2061 = vpop.f32.mrf.mxu0
    %v2062 = vadd.f32 %v2033, %v2061
    %2063 = vdwg.mxu0
    %2064 = vmatpush.msra.mxu0 %v1972
    %2065 = vmatpush.msra.mxu0 %v1971
    %2066 = vmatpush.msra.mxu0 %v1970
    %2067 = vmatpush.msra.mxu0 %v1969
    %2068 = vmatpush.msra.mxu0 %v1968
    %2069 = vmatpush.msra.mxu0 %v1967
    %2070 = vmatpush.msra.mxu0 %v1966
    %2071 = vmatpush.msra.mxu0 %v1965
    %2072 = vmatpush.msra.mxu0 %v1964
    %2073 = vmatpush.msra.mxu0 %v1963
    %2074 = vmatpush.msra.mxu0 %v1962
    %2075 = vmatpush.msra.mxu0 %v1961
    %2076 = vmatpush.msra.mxu0 %v1960
    %2077 = vmatpush.msra.mxu0 %v1959
    %2078 = vmatpush.msra.mxu0 %v1958
    %2079 = vmatpush.msra.mxu0 %v1957
    %2080 = vmatmul.f32.gmra.mxu0 %v1896
    %v2081 = vpop.f32.mrf.mxu0
    %v2082 = vadd.f32 %v2053, %v2081
    %2083 = vmatmul.f32.gmra.mxu0 %v1900
    %v2084 = vpop.f32.mrf.mxu0
    %v2085 = vadd.f32 %v2056, %v2084
    %2086 = vmatmul.f32.gmra.mxu0 %v1904
    %v2087 = vpop.f32.mrf.mxu0
    %v2088 = vadd.f32 %v2059, %v2087
    %2089 = vmatmul.f32.gmra.mxu0 %v1908
    %v2090 = vpop.f32.mrf.mxu0
    %v2091 = vadd.f32 %v2062, %v2090
    %2092 = vdwg.mxu0
    %v2093 = vadd.f32 %v1475, %v2082
    %v2094 = vadd.f32 %v1476, %v2085
    %v2095 = vadd.f32 %v1477, %v2088
    %v2096 = vadd.f32 %v1478, %v2091
    %2097 = vst [vmem:[#allocation19] sm:$0xff] %v2093
    %2098 = vst [vmem:[#allocation19 + $0x8] sm:$0xff] %v2094
    %2099 = vst [vmem:[#allocation19 + $0x10] sm:$0xff] %v2095
    %2100 = vst [vmem:[#allocation19 + $0x18] sm:$0xff] %v2096
    // Predicated region
    $region94: #{tpu_custom_call.1} parent=1 // pred_check
      _
    $region95: #{tpu_custom_call.1} parent=1 // pred_check_branch
      %2102 = sbr.rel (0) target = $region97
    $region96: #{tpu_custom_call.1} parent=1 // pred_region
      %2104 = vsyncadd [#allocation4], 0
      %s2105 = sshll.u32 [#allocation19], 4
      %s2106 = int_to_ptr.vmem [resolvable:$true] %s2105
      %s2107 = sshll.u32 %s13, 4
      %s2108 = int_to_ptr.hbm [resolvable:$true] %s2107
      %2113 = dma.vmem_to_hbm [thread:$0]  %s2106, 512, %s2108, [#allocation4], 128, 128, 8
    $region97: #{tpu_custom_call.1} parent=1 // pred_fallthru
      _
    // Predicated region
    $region98: #{tpu_custom_call.1} parent=1 // pred_check
      _
    $region99: #{tpu_custom_call.1} parent=1 // pred_check_branch
      %2115 = sbr.rel (0) target = $region101
    $region100: #{tpu_custom_call.1} parent=1 // pred_region
      %2117 = dma.done [#allocation4], 512
    $region101: #{tpu_custom_call.1} parent=1 // pred_fallthru
      _
    %2118 = vsyncpa [#allocation3], 1
    %2119 = vsyncpa [#allocation6], 1
    %2120 = vsyncpa [#allocation9], 1
    %2121 = vsyncpa [#allocation12], 1
    %2122 = vsyncpa [#allocation15], 1
    %2123 = vsyncpa [#allocation18], 1
    %2124 = vsyncpa [#allocation4], 1

</llo_original>
